<compile_context>
chip_gen: v7x
topology: tpu7x:2x2x1
jax: 0.10.0
libtpu: 0.0.40
codegen_flags: <defaults>
</compile_context>

<pallas_src>
import math

import jax
import jax.numpy as jnp
from jax import lax
from jax.experimental import pallas as pl
from jax.experimental.pallas import tpu as pltpu


LANE = 128   # TPU lane width; all kernel output last-dims kept multiples of it
TM = 128     # row tile (multiple of 8 sublanes; MXU-native on v5e/v6e/v7x)
TK = 128     # reduction tile for the G contraction
# NOTE(perf): for large N on v7x (64 MiB VMEM/TC) TM=256 / TK=512 still fits
# with double-buffering; on v5e keep TM=128 (single vst slot, lower HBM BW) and
# grow TK instead.  Shapes in this test are small, so 128/128 everywhere.


def _round_up(n, m):
    return ((n + m - 1) // m) * m


def _pad2d(a, rows, cols):
    pr, pc = rows - a.shape[0], cols - a.shape[1]
    if pr == 0 and pc == 0:
        return a
    return jnp.pad(a, ((0, pr), (0, pc)))


# ----------------------------- kernels --------------------------------------

def _xw_bias_kernel(x_ref, w_ref, b_ref, y_ref):
    # Stage 1 (tiny: 2*N*F*H flops): y = x @ W + b, emitted in bf16 so the
    # dominant G-matmul reads half the HBM bytes and runs at bf16 MXU rate.
    y = jnp.dot(x_ref[...], w_ref[...], preferred_element_type=jnp.float32)
    y_ref[...] = (y + b_ref[...]).astype(y_ref.dtype)


def _g_matmul_lrelu_kernel(g_ref, y_ref, o_ref, acc_ref):
    # Stage 2: out = leaky_relu(G @ y, 0.25) tiled over (row tile i, k tile).
    k = pl.program_id(1)

    @pl.when(k == 0)
    def _():
        acc_ref[...] = jnp.zeros_like(acc_ref)

    acc_ref[...] += jnp.dot(g_ref[...], y_ref[...],
                            preferred_element_type=jnp.float32)

    @pl.when(k == pl.num_programs(1) - 1)
    def _():
        z = acc_ref[...]
        o_ref[...] = jnp.where(z >= 0, z, 0.25 * z).astype(o_ref.dtype)


def _proj_kernel(z_ref, w1_ref, b1_ref, w2_ref, b2_ref, o_ref):
    # fc2(elu(fc1(z))) for one row tile; both (small) weight mats VMEM-resident.
    t = jnp.dot(z_ref[...], w1_ref[...],
                preferred_element_type=jnp.float32) + b1_ref[...]
    t = jnp.where(t > 0, t, jnp.exp(t) - 1.0)            # ELU(alpha=1)
    o_ref[...] = (jnp.dot(t, w2_ref[...], preferred_element_type=jnp.float32)
                  + b2_ref[...]).astype(o_ref.dtype)


def _make_sim_kernel(n_valid, tau, tm):
    inv_tau = 1.0 / float(tau)

    def kernel(a_blk_ref, a_all_ref, b_all_ref, loss_ref):
        i = pl.program_id(0)
        a_blk = a_blk_ref[...]                           # (tm, P)
        nt = (((1,), (1,)), ((), ()))                    # contract last dims: a @ x.T
        refl = lax.dot_general(a_blk, a_all_ref[...], nt,
                               preferred_element_type=jnp.float32)
        btw = lax.dot_general(a_blk, b_all_ref[...], nt,
                              preferred_element_type=jnp.float32)
        refl = jnp.exp(refl * inv_tau)
        btw = jnp.exp(btw * inv_tau)
        col = lax.broadcasted_iota(jnp.int32, refl.shape, 1)
        row = lax.broadcasted_iota(jnp.int32, refl.shape, 0)
        valid = col < n_valid                            # mask zero-padded cols
        refl = jnp.where(valid, refl, 0.0)
        btw = jnp.where(valid, btw, 0.0)
        diag = col == (row + i * tm)
        refl_diag = jnp.sum(jnp.where(diag, refl, 0.0), axis=1, keepdims=True)
        btw_diag = jnp.sum(jnp.where(diag, btw, 0.0), axis=1, keepdims=True)
        denom = (jnp.sum(refl, axis=1, keepdims=True)
                 + jnp.sum(btw, axis=1, keepdims=True) - refl_diag)
        # tiny (tm,1) output => masked store, negligible vs the two matmuls
        loss_ref[...] = -jnp.log(btw_diag / denom)

    return kernel


# ----------------------------- wrappers --------------------------------------

def hgcn_forward(x, G, W, b):
    """leaky_relu(G @ (x @ W + b), 0.25); x:[N,F], G:[N,N], W:[F,H], b:[H]."""
    N, F = x.shape
    H = W.shape[1]
    n_pad = _round_up(N, max(TM, TK))
    h_pad = _round_up(H, LANE)                  # lane-dense output columns

    # ---- stage 1: y = x @ W + b (once; bf16 output) ----
    x_p = _pad2d(x, n_pad, F)
    w_p = _pad2d(W, F, h_pad)
    b_p = jnp.pad(b, (0, h_pad - H)).reshape(1, h_pad)
    y = pl.pallas_call(
        _xw_bias_kernel,
        out_shape=jax.ShapeDtypeStruct((n_pad, h_pad), jnp.bfloat16),
        grid_spec=pltpu.PrefetchScalarGridSpec(
            num_scalar_prefetch=0,
            grid=(n_pad // TM,),
            in_specs=[
                pl.BlockSpec((TM, F), lambda i: (i, 0)),
                pl.BlockSpec((F, h_pad), lambda i: (0, 0)),
                pl.BlockSpec((1, h_pad), lambda i: (0, 0)),
            ],
            out_specs=pl.BlockSpec((TM, h_pad), lambda i: (i, 0)),
        ),
        compiler_params=pltpu.CompilerParams(
            dimension_semantics=("parallel",),
            vmem_limit_bytes=32 * 1024 * 1024,
        ),
    )(x_p, w_p, b_p)

    # ---- stage 2: z = leaky_relu(G @ y), tiled (rows, reduction) ----
    g_bf = _pad2d(G, n_pad, n_pad).astype(jnp.bfloat16)
    cost = pl.CostEstimate(
        flops=2 * n_pad * n_pad * h_pad,
        transcendentals=0,
        bytes_accessed=2 * n_pad * n_pad + 2 * n_pad * h_pad + 4 * n_pad * h_pad,
    )
    z = pl.pallas_call(
        _g_matmul_lrelu_kernel,
        out_shape=jax.ShapeDtypeStruct((n_pad, h_pad), jnp.float32),
        grid_spec=pltpu.PrefetchScalarGridSpec(
            num_scalar_prefetch=0,
            grid=(n_pad // TM, n_pad // TK),             # reduction axis last
            in_specs=[
                pl.BlockSpec((TM, TK), lambda i, k: (i, k)),      # G tile
                pl.BlockSpec((TK, h_pad), lambda i, k: (k, 0)),   # y tile
            ],
            out_specs=pl.BlockSpec((TM, h_pad), lambda i, k: (i, 0)),
            scratch_shapes=[pltpu.VMEM((TM, h_pad), jnp.float32)],
        ),
        compiler_params=pltpu.CompilerParams(
            dimension_semantics=("parallel", "arbitrary"),   # row axis -> v7x TCs
            vmem_limit_bytes=32 * 1024 * 1024,
        ),
        cost_estimate=cost,
    )(g_bf, y)
    return z[:N, :H]


def projection_forward(z, w1, b1, w2, b2):
    """fc2(elu(fc1(z))); z:[N,H], w1:[H,P], w2:[P,H]."""
    N, H = z.shape
    P = w1.shape[1]
    n_pad = _round_up(N, TM)
    h_pad = _round_up(H, LANE)
    p_pad = _round_up(P, LANE)
    z_p = _pad2d(z, n_pad, h_pad)
    w1_p = _pad2d(w1, h_pad, p_pad)
    b1_p = jnp.pad(b1, (0, p_pad - P)).reshape(1, p_pad)
    w2_p = _pad2d(w2, p_pad, h_pad)
    b2_p = jnp.pad(b2, (0, h_pad - H)).reshape(1, h_pad)
    out = pl.pallas_call(
        _proj_kernel,
        out_shape=jax.ShapeDtypeStruct((n_pad, h_pad), jnp.float32),
        grid_spec=pltpu.PrefetchScalarGridSpec(
            num_scalar_prefetch=0,
            grid=(n_pad // TM,),
            in_specs=[
                pl.BlockSpec((TM, h_pad), lambda i: (i, 0)),
                pl.BlockSpec((h_pad, p_pad), lambda i: (0, 0)),
                pl.BlockSpec((1, p_pad), lambda i: (0, 0)),
                pl.BlockSpec((p_pad, h_pad), lambda i: (0, 0)),
                pl.BlockSpec((1, h_pad), lambda i: (0, 0)),
            ],
            out_specs=pl.BlockSpec((TM, h_pad), lambda i: (i, 0)),
        ),
        compiler_params=pltpu.CompilerParams(
            dimension_semantics=("parallel",),
            vmem_limit_bytes=32 * 1024 * 1024,
        ),
    )(z_p, w1_p, b1_p, w2_p, b2_p)
    return out[:N, :H]


def _l2_normalize(z, eps=1e-12):
    # TODO(synk): F.normalize and the final scalar sum are left in XLA — they
    # are O(N*P)/O(N) glue; the O(N^2*P) similarity matmuls run in Pallas.
    n = jnp.sqrt(jnp.sum(z * z, axis=1, keepdims=True))
    return z / jnp.maximum(n, eps)


def contrastive_sim(h_a, h_b, tau):
    """sum_i -log( exp(cos(a_i,b_i)/tau) / (sum_j exp(cos(a_i,a_j)/tau)
                   + sum_j exp(cos(a_i,b_j)/tau) - exp(1/tau)) )."""
    N, P = h_a.shape
    n_pad = _round_up(N, TM)
    p_pad = _round_up(P, LANE)
    a = _pad2d(_l2_normalize(h_a), n_pad, p_pad)
    b = _pad2d(_l2_normalize(h_b), n_pad, p_pad)
    per_row = pl.pallas_call(
        _make_sim_kernel(N, tau, TM),
        out_shape=jax.ShapeDtypeStruct((n_pad, 1), jnp.float32),
        grid_spec=pltpu.PrefetchScalarGridSpec(
            num_scalar_prefetch=0,
            grid=(n_pad // TM,),
            in_specs=[
                pl.BlockSpec((TM, p_pad), lambda i: (i, 0)),      # query rows
                pl.BlockSpec((n_pad, p_pad), lambda i: (0, 0)),   # all of a
                pl.BlockSpec((n_pad, p_pad), lambda i: (0, 0)),   # all of b
            ],
            out_specs=pl.BlockSpec((TM, 1), lambda i: (i, 0)),
        ),
        compiler_params=pltpu.CompilerParams(
            dimension_semantics=("parallel",),
            vmem_limit_bytes=32 * 1024 * 1024,
        ),
    )(a, a, b)
    return jnp.sum(per_row[:N, 0])


def cl_hgcn_forward(params, x1, adj1, x2, adj2, tau=0.5, alpha=0.5):
    z1 = hgcn_forward(x1, adj1, params["w_hg1"], params["b_hg1"])
    z2 = hgcn_forward(x2, adj2, params["w_hg2"], params["b_hg2"])
    h1 = projection_forward(z1, params["w_fc1"], params["b_fc1"],
                            params["w_fc2"], params["b_fc2"])
    h2 = projection_forward(z2, params["w_fc1"], params["b_fc1"],
                            params["w_fc2"], params["b_fc2"])
    loss = (alpha * contrastive_sim(h1, h2, tau)
            + (1.0 - alpha) * contrastive_sim(h2, h1, tau))
    return z1, z2, loss


# ----------------------------- pure-JAX reference ----------------------------

def _hgcn_ref(x, G, W, b):
    z = G @ (x @ W + b[None, :])
    return jnp.where(z >= 0, z, 0.25 * z)


def _proj_ref(z, w1, b1, w2, b2):
    t = z @ w1 + b1[None, :]
    t = jnp.where(t > 0, t, jnp.exp(t) - 1.0)
    return t @ w2 + b2[None, :]


def _sim_ref(h1, h2, tau):
    a = _l2_normalize(h1)
    b = _l2_normalize(h2)
    refl = jnp.exp(a @ a.T / tau)
    btw = jnp.exp(a @ b.T / tau)
    vec = -jnp.log(jnp.diag(btw) / (refl.sum(1) + btw.sum(1) - jnp.diag(refl)))
    return vec.sum()


def _rel_err(a, b):
    return float(jnp.linalg.norm(a - b) / (jnp.linalg.norm(b) + 1e-12))


# ----------------------------- test -----------------------------------------

if __name__ == "__main__":
    # Module hard-codes the conv weight at (962, 256); N and proj width are free.
    N, F, H, P = 256, 962, 256, 128
    tau, alpha = 0.5, 0.5

    key = jax.random.PRNGKey(0)
    ks = jax.random.split(key, 12)
    x1 = jax.random.normal(ks[0], (N, F), jnp.float32)
    x2 = jax.random.normal(ks[1], (N, F), jnp.float32)
    scale = 1.0 / math.sqrt(N)
    adj1 = jax.random.normal(ks[2], (N, N), jnp.float32) * scale
    adj2 = jax.random.normal(ks[3], (N, N), jnp.float32) * scale

    stdv = 1.0 / math.sqrt(H)          # HGNN_conv.reset_parameters
    sp = 1.0 / math.sqrt(P)
    params = dict(
        w_hg1=jax.random.uniform(ks[4], (F, H), jnp.float32, -stdv, stdv),
        b_hg1=jax.random.uniform(ks[5], (H,), jnp.float32, -stdv, stdv),
        w_hg2=jax.random.uniform(ks[6], (F, H), jnp.float32, -stdv, stdv),
        b_hg2=jax.random.uniform(ks[7], (H,), jnp.float32, -stdv, stdv),
        w_fc1=jax.random.uniform(ks[8], (H, P), jnp.float32, -stdv, stdv),
        b_fc1=jax.random.uniform(ks[9], (P,), jnp.float32, -stdv, stdv),
        w_fc2=jax.random.uniform(ks[10], (P, H), jnp.float32, -sp, sp),
        b_fc2=jax.random.uniform(ks[11], (H,), jnp.float32, -sp, sp),
    )

    z1, z2, loss = cl_hgcn_forward(params, x1, adj1, x2, adj2,
                                   tau=tau, alpha=alpha)
    z1, z2, loss = jax.block_until_ready((z1, z2, loss))

    # Reference (f32 end-to-end); kernel uses bf16 MXU inputs -> loose tolerance.
    z1_ref = _hgcn_ref(x1, adj1, params["w_hg1"], params["b_hg1"])
    z2_ref = _hgcn_ref(x2, adj2, params["w_hg2"], params["b_hg2"])
    h1_ref = _proj_ref(z1_ref, params["w_fc1"], params["b_fc1"],
                       params["w_fc2"], params["b_fc2"])
    h2_ref = _proj_ref(z2_ref, params["w_fc1"], params["b_fc1"],
                       params["w_fc2"], params["b_fc2"])
    loss_ref = (alpha * _sim_ref(h1_ref, h2_ref, tau)
                + (1.0 - alpha) * _sim_ref(h2_ref, h1_ref, tau))

    assert z1.shape == (N, H) and z2.shape == (N, H)
    assert _rel_err(z1, z1_ref) < 2e-2, "z1 mismatch vs reference"
    assert _rel_err(z2, z2_ref) < 2e-2, "z2 mismatch vs reference"
    assert (abs(float(loss) - float(loss_ref))
            / (abs(float(loss_ref)) + 1e-12)) < 2e-2, "loss mismatch vs reference"

    print("KERNEL_OK")
</pallas_src>

<mosaic_0001>
module attributes {stable_mosaic.version = 11 : i64} {
  func.func @_xw_bias_kernel(%arg0: i32, %arg1: memref<128x962xf32, #tpu.memory_space<vmem>>, %arg2: memref<962x256xf32, #tpu.memory_space<vmem>>, %arg3: memref<1x256xf32, #tpu.memory_space<vmem>>, %arg4: memref<128x256xbf16, #tpu.memory_space<vmem>>) attributes {dimension_semantics = [#tpu.dimension_semantics<parallel>], iteration_bounds = array<i64: 2>, scalar_prefetch = 0 : i64, scratch_operands = 0 : i64, tpu.core_type = #tpu.core_type<tc>, window_params = [{transform_indices = @transform_0, window_bounds = array<i64: 128, 962>}, {pipeline_mode = #tpu.pipeline_mode<synchronous>, transform_indices = @transform_1, window_bounds = array<i64: 962, 256>}, {pipeline_mode = #tpu.pipeline_mode<synchronous>, transform_indices = @transform_2, window_bounds = array<i64: 1, 256>}, {transform_indices = @transform_3, window_bounds = array<i64: 128, 256>}]} {
    %c0 = arith.constant 0 : index
    %c0_0 = arith.constant 0 : index
    %0 = vector.load %arg1[%c0, %c0_0] : memref<128x962xf32, #tpu.memory_space<vmem>>, vector<128x962xf32>
    %c0_1 = arith.constant 0 : index
    %c0_2 = arith.constant 0 : index
    %1 = vector.load %arg2[%c0_1, %c0_2] : memref<962x256xf32, #tpu.memory_space<vmem>>, vector<962x256xf32>
    %cst = arith.constant dense<0.000000e+00> : vector<128x256xf32>
    %2 = tpu.matmul %0, %1, %cst {dimension_numbers = #tpu.dot_dimension_numbers<[1], [0], [0], [1], [0, 0, 1, 1], [], []>} : vector<128x962xf32>, vector<962x256xf32>, vector<128x256xf32> -> vector<128x256xf32>
    %c0_3 = arith.constant 0 : index
    %c0_4 = arith.constant 0 : index
    %3 = vector.load %arg3[%c0_3, %c0_4] : memref<1x256xf32, #tpu.memory_space<vmem>>, vector<1x256xf32>
    %4 = vector.broadcast %3 : vector<1x256xf32> to vector<128x256xf32>
    %5 = arith.addf %2, %4 : vector<128x256xf32>
    %6 = arith.truncf %5 : vector<128x256xf32> to vector<128x256xbf16>
    %c0_5 = arith.constant 0 : index
    %c0_6 = arith.constant 0 : index
    %7 = vector.load %arg4[%c0_5, %c0_6] : memref<128x256xbf16, #tpu.memory_space<vmem>>, vector<128x256xbf16>
    tpu.vector_store %arg4[%c0_5, %c0_6], %6 {strides = array<i32>} : memref<128x256xbf16, #tpu.memory_space<vmem>>, vector<128x256xbf16>,
    return
  }
  func.func @transform_0(%arg0: i32) -> (i32, i32) {
    %c0_i32 = arith.constant 0 : i32
    %c0_i32_0 = arith.constant 0 : i32
    return %arg0, %c0_i32 : i32, i32
  }
  func.func @transform_1(%arg0: i32) -> (i32, i32) {
    %c0_i32 = arith.constant 0 : i32
    %c0_i32_0 = arith.constant 0 : i32
    %c0_i32_1 = arith.constant 0 : i32
    return %c0_i32, %c0_i32_0 : i32, i32
  }
  func.func @transform_2(%arg0: i32) -> (i32, i32) {
    %c0_i32 = arith.constant 0 : i32
    %c0_i32_0 = arith.constant 0 : i32
    %c0_i32_1 = arith.constant 0 : i32
    return %c0_i32, %c0_i32_0 : i32, i32
  }
  func.func @transform_3(%arg0: i32) -> (i32, i32) {
    %c0_i32 = arith.constant 0 : i32
    %c0_i32_0 = arith.constant 0 : i32
    return %arg0, %c0_i32 : i32, i32
  }
}

</mosaic_0001>

<llo_original>
// kernel: tpu_custom_call.1
$region0: #{tpu_custom_call.1}
  #allocation0 [shape = 'u32[]', space=smem, size = 0x4, offset = 0x4, fixed_abs, tag = 'smem constant byte address 0x4 - core index']
  #allocation1 [shape = 'u32[144,128]{1,0:T(1,128)}', space=vmem, size = 0x12000, scoped, tag = 'internal scratch']
  %s0 = inlined_call_operand.vmem [shape: f32[256,962], index: 0, kind: input, shape index: {}]
  %s1 = inlined_call_operand.vmem [shape: f32[962,256], index: 1, kind: input, shape index: {}]
  %s2 = inlined_call_operand.vmem [shape: f32[1,256], index: 2, kind: input, shape index: {}]
  %s3 = inlined_call_operand.hbm [shape: bf16[256,256], index: 3, kind: output, shape index: {}]
  %s4 = sld [smem:[#allocation0]]
  $region45: #{tpu_custom_call.1} parent=0
    _
  %s6 = ssub.s32 1, %s4
  %s7 = scalar_select 0, %s6, %s4
  $region1: #{tpu_custom_call.1} parent=0
    #allocation2 [shape = 'u8[131072]{0}', space=vmem, size = 0x20000, scoped, tag = 'output window, operand 0']
    #allocation3 [shape = 's32[2]{0}', space=sflag, size = 0x8, scoped, tag = 'scoped memory for tpu_custom_call.1']
    %8 = vsyncpa [#allocation3], 0
    %s9 = scalar_lea.sflag [#allocation3], 1
    %10 = vsyncpa %s9, 0
    loop: start=0, step=1, limit=4
    $region2: #{tpu_custom_call.1} parent=1 // loop_pre_header
      _
    $region3: #{tpu_custom_call.1} parent=1 // loop_header
      %s12 = sphi 0, %s16
      %p13 = scmp.ge.s32.totalorder %s12, 4
      %s22 = sphi 0, %s24
      %s25 = sphi 0, %s22
      %s26 = sphi 0, %s25
      %s42 = sphi 0, %s26
      %s46 = sphi 0, %s46
      %s48 = sphi 0, %s46
      %s49 = sphi 0, %s48
      %s63 = sphi 0, %s49
      %s67 = sphi 0, %s67
      %s69 = sphi 0, %s67
      %s70 = sphi 0, %s69
      %s84 = sphi 0, %s70
      %s90 = sphi 0, %s92
      %s93 = sphi 0, %s90
      %s94 = sphi 0, %s93
      %s110 = sphi 0, %s94
    $region4: #{tpu_custom_call.1} parent=1 // loop_header_branch
      %15 = sbr.rel (%p13) target = $region8
    $region5: #{tpu_custom_call.1} parent=1 // loop_body
      %s17 = ssub.s32 %s12, 1
      %s18 = ssub.s32 %s12, 2
      %s19 = sadd.s32 %s12, 1
      %s20 = ssub.s32 %s12, %s19
      %p21 = scmp.eq.s32.totalorder %s20, 0
      %s23 = sadd.s32 %s22, 1
      %s24 = scalar_select %p21, %s22, %s23
      %p27 = pneg %p21
      %p28 = scmp.eq.s32.totalorder %s12, 1
      %p29 = por %p27, %p28
      %p30 = scmp.ne.s32.totalorder %s22, %s25
      %p31 = scmp.eq.s32.totalorder %s12, 0
      %p32 = por %p30, %p31
      %p33 = scmp.ne.s32.totalorder %s22, %s25
      %p34 = scmp.eq.s32.totalorder %s17, 1
      %p35 = por %p33, %p34
      %p36 = scmp.ne.s32.totalorder %s25, %s26
      %p37 = scmp.eq.s32.totalorder %s17, 0
      %p38 = por %p36, %p37
      %p39 = scmp.ne.s32.totalorder %s25, %s26
      %p40 = scmp.eq.s32.totalorder %s18, 1
      %p41 = por %p39, %p40
      %p43 = scmp.ne.s32.totalorder %s26, %s42
      %p44 = scmp.eq.s32.totalorder %s18, 0
      %p45 = por %p43, %p44
      %s47 = sadd.s32 %s46, 1
      %p50 = scmp.eq.s32.totalorder %s12, 1
      %p51 = scmp.ne.s32.totalorder %s46, %s48
      %p52 = scmp.eq.s32.totalorder %s12, 0
      %p53 = por %p51, %p52
      %p54 = scmp.ne.s32.totalorder %s46, %s48
      %p55 = scmp.eq.s32.totalorder %s17, 1
      %p56 = por %p54, %p55
      %p57 = scmp.ne.s32.totalorder %s48, %s49
      %p58 = scmp.eq.s32.totalorder %s17, 0
      %p59 = por %p57, %p58
      %p60 = scmp.ne.s32.totalorder %s48, %s49
      %p61 = scmp.eq.s32.totalorder %s18, 1
      %p62 = por %p60, %p61
      %p64 = scmp.ne.s32.totalorder %s49, %s63
      %p65 = scmp.eq.s32.totalorder %s18, 0
      %p66 = por %p64, %p65
      %s68 = sadd.s32 %s67, 1
      %p71 = scmp.eq.s32.totalorder %s12, 1
      %p72 = scmp.ne.s32.totalorder %s67, %s69
      %p73 = scmp.eq.s32.totalorder %s12, 0
      %p74 = por %p72, %p73
      %p75 = scmp.ne.s32.totalorder %s67, %s69
      %p76 = scmp.eq.s32.totalorder %s17, 1
      %p77 = por %p75, %p76
      %p78 = scmp.ne.s32.totalorder %s69, %s70
      %p79 = scmp.eq.s32.totalorder %s17, 0
      %p80 = por %p78, %p79
      %p81 = scmp.ne.s32.totalorder %s69, %s70
      %p82 = scmp.eq.s32.totalorder %s18, 1
      %p83 = por %p81, %p82
      %p85 = scmp.ne.s32.totalorder %s70, %s84
      %p86 = scmp.eq.s32.totalorder %s18, 0
      %p87 = por %p85, %p86
      %s88 = ssub.s32 %s12, %s19
      %p89 = scmp.eq.s32.totalorder %s88, 0
      %s91 = sadd.s32 %s90, 1
      %s92 = scalar_select %p89, %s90, %s91
      %p95 = pneg %p89
      %p96 = scmp.eq.s32.totalorder %s12, 1
      %p97 = por %p95, %p96
      %p98 = scmp.ne.s32.totalorder %s90, %s93
      %p99 = scmp.eq.s32.totalorder %s12, 0
      %p100 = por %p98, %p99
      %p101 = scmp.ne.s32.totalorder %s90, %s93
      %p102 = scmp.eq.s32.totalorder %s17, 1
      %p103 = por %p101, %p102
      %p104 = scmp.ne.s32.totalorder %s93, %s94
      %p105 = scmp.eq.s32.totalorder %s17, 0
      %p106 = por %p104, %p105
      %p107 = scmp.ne.s32.totalorder %s93, %s94
      %p108 = scmp.eq.s32.totalorder %s18, 1
      %p109 = por %p107, %p108
      %p111 = scmp.ne.s32.totalorder %s94, %s110
      %p112 = scmp.eq.s32.totalorder %s18, 0
      %p113 = por %p111, %p112
      %p114 = scmp.le.s32.totalorder 1, %s12
      %p115 = scmp.lt.s32.totalorder %s12, 3
      %p116 = pnand %p114, %p115
      %p117 = pneg %p116
      // Predicated region
      $region9: #{tpu_custom_call.1} parent=5 // pred_check
        _
      $region10: #{tpu_custom_call.1} parent=5 // pred_check_branch
        %119 = sbr.rel (%p116) target = $region12
      $region11: #{tpu_custom_call.1} parent=5 // pred_region
        %s120 = ssub.s32 %s12, 1
        // Predicated region
        $region13: #{tpu_custom_call.1} parent=11 // pred_check
          %p121 = pneg %p59
        $region14: #{tpu_custom_call.1} parent=11 // pred_check_branch
          %123 = sbr.rel (%p121) target = $region16
        $region15: #{tpu_custom_call.1} parent=11 // pred_region
          _
        $region16: #{tpu_custom_call.1} parent=11 // pred_fallthru
          _
        // Predicated region
        $region17: #{tpu_custom_call.1} parent=11 // pred_check
          %p124 = pneg %p80
        $region18: #{tpu_custom_call.1} parent=11 // pred_check_branch
          %126 = sbr.rel (%p124) target = $region20
        $region19: #{tpu_custom_call.1} parent=11 // pred_region
          _
        $region20: #{tpu_custom_call.1} parent=11 // pred_fallthru
          _
      $region12: #{tpu_custom_call.1} parent=5 // pred_fallthru
        _
      %p127 = scmp.lt.s32.totalorder %s12, 2
      // Predicated region
      $region21: #{tpu_custom_call.1} parent=5 // pred_check
        %p128 = pneg %p127
      $region22: #{tpu_custom_call.1} parent=5 // pred_check_branch
        %130 = sbr.rel (%p128) target = $region24
      $region23: #{tpu_custom_call.1} parent=5 // pred_region
        // Predicated region
        $region25: #{tpu_custom_call.1} parent=23 // pred_check
          %p131 = pneg %p32
        $region26: #{tpu_custom_call.1} parent=23 // pred_check_branch
          %133 = sbr.rel (%p131) target = $region28
        $region27: #{tpu_custom_call.1} parent=23 // pred_region
          %s134 = smul.u32 16, %s12
          %p135 = scmp.lt.s32.totalorder %s134, 31
          %s136 = scalar_select %p135, %s134, 31
          %s137 = smul.addr %s136, 8
          %s138 = smul.addr %s137, 8
          %s139 = scalar_lea.vmem %s0, %s138
          %s140 = smul.u32 16, %s12
        $region28: #{tpu_custom_call.1} parent=23 // pred_fallthru
          _
      $region24: #{tpu_custom_call.1} parent=5 // pred_fallthru
        _
      %p141 = scmp.le.s32.totalorder 1, %s12
      %p142 = scmp.lt.s32.totalorder %s12, 3
      %p143 = pnand %p141, %p142
      %p144 = pneg %p143
      // Predicated region
      $region29: #{tpu_custom_call.1} parent=5 // pred_check
        _
      $region30: #{tpu_custom_call.1} parent=5 // pred_check_branch
        %146 = sbr.rel (%p143) target = $region32
      $region31: #{tpu_custom_call.1} parent=5 // pred_region
        %s147 = ssub.s32 %s12, 1
        %s148 = smul.u32 16, %s17
        %p149 = scmp.lt.s32.totalorder %s148, 31
        %s150 = scalar_select %p149, %s148, 31
        %s151 = smul.addr %s150, 8
        %s152 = smul.addr %s151, 8
        %s153 = scalar_lea.vmem %s0, %s152
        %p154 = pneg %p38
        %p155 = pneg %p35
        %p156 = pneg %p59
        %p157 = pneg %p56
        %p158 = pneg %p80
        %p159 = pneg %p77
        %p160 = pneg %p106
        %p161 = pneg %p103
        %s162 = sand.u32 %s93, 1
        %s163 = scalar_lea.sflag [#allocation3], %s162
        %s164 = sand.u32 %s93, 1
        %s165 = smul.addr %s164, 128
        %s166 = scalar_lea.vmem [#allocation2], %s165
        %s167 = smul.u32 16, %s17
        %p168 = scmp.lt.s32.totalorder %s167, 31
        %s169 = scalar_select %p168, %s167, 31
        %s170 = smul.addr %s169, 8
        %s171 = smul.addr %s170, 8
        %s172 = scalar_lea.vmem %s0, %s171
        %s173 = smul.u32 16, %s17
        %s174 = smul.u32 16, %s17
        %v175 = vld [vmem:[%s172] sm:$0xff]
        %v176 = vld [vmem:[%s172 + $0x8] sm:$0xff]
        %v177 = vld [vmem:[%s172 + $0x10] sm:$0xff]
        %v178 = vld [vmem:[%s172 + $0x18] sm:$0xff]
        %v179 = vld [vmem:[%s172 + $0x20] sm:$0xff]
        %v180 = vld [vmem:[%s172 + $0x28] sm:$0xff]
        %v181 = vld [vmem:[%s172 + $0x30] sm:$0xff]
        %v182 = vld [vmem:[%s172 + $0x38] sm:$0xff]
        %v183 = vld [vmem:[%s172 + $0x40] sm:$0xff]
        %v184 = vld [vmem:[%s172 + $0x48] sm:$0xff]
        %v185 = vld [vmem:[%s172 + $0x50] sm:$0xff]
        %v186 = vld [vmem:[%s172 + $0x58] sm:$0xff]
        %v187 = vld [vmem:[%s172 + $0x60] sm:$0xff]
        %v188 = vld [vmem:[%s172 + $0x68] sm:$0xff]
        %v189 = vld [vmem:[%s172 + $0x70] sm:$0xff]
        %v190 = vld [vmem:[%s172 + $0x78] sm:$0xff]
        %v191 = vld [vmem:[%s172 + $0x80] sm:$0xff]
        %v192 = vld [vmem:[%s172 + $0x88] sm:$0xff]
        %v193 = vld [vmem:[%s172 + $0x90] sm:$0xff]
        %v194 = vld [vmem:[%s172 + $0x98] sm:$0xff]
        %v195 = vld [vmem:[%s172 + $0xa0] sm:$0xff]
        %v196 = vld [vmem:[%s172 + $0xa8] sm:$0xff]
        %v197 = vld [vmem:[%s172 + $0xb0] sm:$0xff]
        %v198 = vld [vmem:[%s172 + $0xb8] sm:$0xff]
        %v199 = vld [vmem:[%s172 + $0xc0] sm:$0xff]
        %v200 = vld [vmem:[%s172 + $0xc8] sm:$0xff]
        %v201 = vld [vmem:[%s172 + $0xd0] sm:$0xff]
        %v202 = vld [vmem:[%s172 + $0xd8] sm:$0xff]
        %v203 = vld [vmem:[%s172 + $0xe0] sm:$0xff]
        %v204 = vld [vmem:[%s172 + $0xe8] sm:$0xff]
        %v205 = vld [vmem:[%s172 + $0xf0] sm:$0xff]
        %v206 = vld [vmem:[%s172 + $0xf8] sm:$0xff]
        %v207 = vld [vmem:[%s172 + $0x100] sm:$0xff]
        %v208 = vld [vmem:[%s172 + $0x108] sm:$0xff]
        %v209 = vld [vmem:[%s172 + $0x110] sm:$0xff]
        %v210 = vld [vmem:[%s172 + $0x118] sm:$0xff]
        %v211 = vld [vmem:[%s172 + $0x120] sm:$0xff]
        %v212 = vld [vmem:[%s172 + $0x128] sm:$0xff]
        %v213 = vld [vmem:[%s172 + $0x130] sm:$0xff]
        %v214 = vld [vmem:[%s172 + $0x138] sm:$0xff]
        %v215 = vld [vmem:[%s172 + $0x140] sm:$0xff]
        %v216 = vld [vmem:[%s172 + $0x148] sm:$0xff]
        %v217 = vld [vmem:[%s172 + $0x150] sm:$0xff]
        %v218 = vld [vmem:[%s172 + $0x158] sm:$0xff]
        %v219 = vld [vmem:[%s172 + $0x160] sm:$0xff]
        %v220 = vld [vmem:[%s172 + $0x168] sm:$0xff]
        %v221 = vld [vmem:[%s172 + $0x170] sm:$0xff]
        %v222 = vld [vmem:[%s172 + $0x178] sm:$0xff]
        %v223 = vld [vmem:[%s172 + $0x180] sm:$0xff]
        %v224 = vld [vmem:[%s172 + $0x188] sm:$0xff]
        %v225 = vld [vmem:[%s172 + $0x190] sm:$0xff]
        %v226 = vld [vmem:[%s172 + $0x198] sm:$0xff]
        %v227 = vld [vmem:[%s172 + $0x1a0] sm:$0xff]
        %v228 = vld [vmem:[%s172 + $0x1a8] sm:$0xff]
        %v229 = vld [vmem:[%s172 + $0x1b0] sm:$0xff]
        %v230 = vld [vmem:[%s172 + $0x1b8] sm:$0xff]
        %v231 = vld [vmem:[%s172 + $0x1c0] sm:$0xff]
        %v232 = vld [vmem:[%s172 + $0x1c8] sm:$0xff]
        %v233 = vld [vmem:[%s172 + $0x1d0] sm:$0xff]
        %v234 = vld [vmem:[%s172 + $0x1d8] sm:$0xff]
        %v235 = vld [vmem:[%s172 + $0x1e0] sm:$0xff]
        %v236 = vld [vmem:[%s172 + $0x1e8] sm:$0xff]
        %v237 = vld [vmem:[%s172 + $0x1f0] sm:$0xff]
        %v238 = vld [vmem:[%s172 + $0x1f8] sm:$0xff]
        %v239 = vld [vmem:[%s172 + $0x200] sm:$0xff]
        %v240 = vld [vmem:[%s172 + $0x208] sm:$0xff]
        %v241 = vld [vmem:[%s172 + $0x210] sm:$0xff]
        %v242 = vld [vmem:[%s172 + $0x218] sm:$0xff]
        %v243 = vld [vmem:[%s172 + $0x220] sm:$0xff]
        %v244 = vld [vmem:[%s172 + $0x228] sm:$0xff]
        %v245 = vld [vmem:[%s172 + $0x230] sm:$0xff]
        %v246 = vld [vmem:[%s172 + $0x238] sm:$0xff]
        %v247 = vld [vmem:[%s172 + $0x240] sm:$0xff]
        %v248 = vld [vmem:[%s172 + $0x248] sm:$0xff]
        %v249 = vld [vmem:[%s172 + $0x250] sm:$0xff]
        %v250 = vld [vmem:[%s172 + $0x258] sm:$0xff]
        %v251 = vld [vmem:[%s172 + $0x260] sm:$0xff]
        %v252 = vld [vmem:[%s172 + $0x268] sm:$0xff]
        %v253 = vld [vmem:[%s172 + $0x270] sm:$0xff]
        %v254 = vld [vmem:[%s172 + $0x278] sm:$0xff]
        %v255 = vld [vmem:[%s172 + $0x280] sm:$0xff]
        %v256 = vld [vmem:[%s172 + $0x288] sm:$0xff]
        %v257 = vld [vmem:[%s172 + $0x290] sm:$0xff]
        %v258 = vld [vmem:[%s172 + $0x298] sm:$0xff]
        %v259 = vld [vmem:[%s172 + $0x2a0] sm:$0xff]
        %v260 = vld [vmem:[%s172 + $0x2a8] sm:$0xff]
        %v261 = vld [vmem:[%s172 + $0x2b0] sm:$0xff]
        %v262 = vld [vmem:[%s172 + $0x2b8] sm:$0xff]
        %v263 = vld [vmem:[%s172 + $0x2c0] sm:$0xff]
        %v264 = vld [vmem:[%s172 + $0x2c8] sm:$0xff]
        %v265 = vld [vmem:[%s172 + $0x2d0] sm:$0xff]
        %v266 = vld [vmem:[%s172 + $0x2d8] sm:$0xff]
        %v267 = vld [vmem:[%s172 + $0x2e0] sm:$0xff]
        %v268 = vld [vmem:[%s172 + $0x2e8] sm:$0xff]
        %v269 = vld [vmem:[%s172 + $0x2f0] sm:$0xff]
        %v270 = vld [vmem:[%s172 + $0x2f8] sm:$0xff]
        %v271 = vld [vmem:[%s172 + $0x300] sm:$0xff]
        %v272 = vld [vmem:[%s172 + $0x308] sm:$0xff]
        %v273 = vld [vmem:[%s172 + $0x310] sm:$0xff]
        %v274 = vld [vmem:[%s172 + $0x318] sm:$0xff]
        %v275 = vld [vmem:[%s172 + $0x320] sm:$0xff]
        %v276 = vld [vmem:[%s172 + $0x328] sm:$0xff]
        %v277 = vld [vmem:[%s172 + $0x330] sm:$0xff]
        %v278 = vld [vmem:[%s172 + $0x338] sm:$0xff]
        %v279 = vld [vmem:[%s172 + $0x340] sm:$0xff]
        %v280 = vld [vmem:[%s172 + $0x348] sm:$0xff]
        %v281 = vld [vmem:[%s172 + $0x350] sm:$0xff]
        %v282 = vld [vmem:[%s172 + $0x358] sm:$0xff]
        %v283 = vld [vmem:[%s172 + $0x360] sm:$0xff]
        %v284 = vld [vmem:[%s172 + $0x368] sm:$0xff]
        %v285 = vld [vmem:[%s172 + $0x370] sm:$0xff]
        %v286 = vld [vmem:[%s172 + $0x378] sm:$0xff]
        %v287 = vld [vmem:[%s172 + $0x380] sm:$0xff]
        %v288 = vld [vmem:[%s172 + $0x388] sm:$0xff]
        %v289 = vld [vmem:[%s172 + $0x390] sm:$0xff]
        %v290 = vld [vmem:[%s172 + $0x398] sm:$0xff]
        %v291 = vld [vmem:[%s172 + $0x3a0] sm:$0xff]
        %v292 = vld [vmem:[%s172 + $0x3a8] sm:$0xff]
        %v293 = vld [vmem:[%s172 + $0x3b0] sm:$0xff]
        %v294 = vld [vmem:[%s172 + $0x3b8] sm:$0xff]
        %v295 = vld [vmem:[%s172 + $0x3c0] sm:$0xff]
        %v296 = vld [vmem:[%s172 + $0x3c8] sm:$0xff]
        %v297 = vld [vmem:[%s172 + $0x3d0] sm:$0xff]
        %v298 = vld [vmem:[%s172 + $0x3d8] sm:$0xff]
        %v299 = vld [vmem:[%s172 + $0x3e0] sm:$0xff]
        %v300 = vld [vmem:[%s172 + $0x3e8] sm:$0xff]
        %v301 = vld [vmem:[%s172 + $0x3f0] sm:$0xff]
        %v302 = vld [vmem:[%s172 + $0x3f8] sm:$0xff]
        %v303 = vld [vmem:[%s1] sm:$0xff]
        %v304 = vld [vmem:[%s1 + $0x8] sm:$0xff]
        %v305 = vld [vmem:[%s1 + $0x10] sm:$0xff]
        %v306 = vld [vmem:[%s1 + $0x18] sm:$0xff]
        %v307 = vld [vmem:[%s1 + $0x20] sm:$0xff]
        %v308 = vld [vmem:[%s1 + $0x28] sm:$0xff]
        %v309 = vld [vmem:[%s1 + $0x30] sm:$0xff]
        %v310 = vld [vmem:[%s1 + $0x38] sm:$0xff]
        %v311 = vld [vmem:[%s1 + $0x40] sm:$0xff]
        %v312 = vld [vmem:[%s1 + $0x48] sm:$0xff]
        %v313 = vld [vmem:[%s1 + $0x50] sm:$0xff]
        %v314 = vld [vmem:[%s1 + $0x58] sm:$0xff]
        %v315 = vld [vmem:[%s1 + $0x60] sm:$0xff]
        %v316 = vld [vmem:[%s1 + $0x68] sm:$0xff]
        %v317 = vld [vmem:[%s1 + $0x70] sm:$0xff]
        %v318 = vld [vmem:[%s1 + $0x78] sm:$0xff]
        %v319 = vld [vmem:[%s1 + $0x80] sm:$0xff]
        %v320 = vld [vmem:[%s1 + $0x88] sm:$0xff]
        %v321 = vld [vmem:[%s1 + $0x90] sm:$0xff]
        %v322 = vld [vmem:[%s1 + $0x98] sm:$0xff]
        %v323 = vld [vmem:[%s1 + $0xa0] sm:$0xff]
        %v324 = vld [vmem:[%s1 + $0xa8] sm:$0xff]
        %v325 = vld [vmem:[%s1 + $0xb0] sm:$0xff]
        %v326 = vld [vmem:[%s1 + $0xb8] sm:$0xff]
        %v327 = vld [vmem:[%s1 + $0xc0] sm:$0xff]
        %v328 = vld [vmem:[%s1 + $0xc8] sm:$0xff]
        %v329 = vld [vmem:[%s1 + $0xd0] sm:$0xff]
        %v330 = vld [vmem:[%s1 + $0xd8] sm:$0xff]
        %v331 = vld [vmem:[%s1 + $0xe0] sm:$0xff]
        %v332 = vld [vmem:[%s1 + $0xe8] sm:$0xff]
        %v333 = vld [vmem:[%s1 + $0xf0] sm:$0xff]
        %v334 = vld [vmem:[%s1 + $0xf8] sm:$0xff]
        %v335 = vld [vmem:[%s1 + $0x100] sm:$0xff]
        %v336 = vld [vmem:[%s1 + $0x108] sm:$0xff]
        %v337 = vld [vmem:[%s1 + $0x110] sm:$0xff]
        %v338 = vld [vmem:[%s1 + $0x118] sm:$0xff]
        %v339 = vld [vmem:[%s1 + $0x120] sm:$0xff]
        %v340 = vld [vmem:[%s1 + $0x128] sm:$0xff]
        %v341 = vld [vmem:[%s1 + $0x130] sm:$0xff]
        %v342 = vld [vmem:[%s1 + $0x138] sm:$0xff]
        %v343 = vld [vmem:[%s1 + $0x140] sm:$0xff]
        %v344 = vld [vmem:[%s1 + $0x148] sm:$0xff]
        %v345 = vld [vmem:[%s1 + $0x150] sm:$0xff]
        %v346 = vld [vmem:[%s1 + $0x158] sm:$0xff]
        %v347 = vld [vmem:[%s1 + $0x160] sm:$0xff]
        %v348 = vld [vmem:[%s1 + $0x168] sm:$0xff]
        %v349 = vld [vmem:[%s1 + $0x170] sm:$0xff]
        %v350 = vld [vmem:[%s1 + $0x178] sm:$0xff]
        %v351 = vld [vmem:[%s1 + $0x180] sm:$0xff]
        %v352 = vld [vmem:[%s1 + $0x188] sm:$0xff]
        %v353 = vld [vmem:[%s1 + $0x190] sm:$0xff]
        %v354 = vld [vmem:[%s1 + $0x198] sm:$0xff]
        %v355 = vld [vmem:[%s1 + $0x1a0] sm:$0xff]
        %v356 = vld [vmem:[%s1 + $0x1a8] sm:$0xff]
        %v357 = vld [vmem:[%s1 + $0x1b0] sm:$0xff]
        %v358 = vld [vmem:[%s1 + $0x1b8] sm:$0xff]
        %v359 = vld [vmem:[%s1 + $0x1c0] sm:$0xff]
        %v360 = vld [vmem:[%s1 + $0x1c8] sm:$0xff]
        %v361 = vld [vmem:[%s1 + $0x1d0] sm:$0xff]
        %v362 = vld [vmem:[%s1 + $0x1d8] sm:$0xff]
        %v363 = vld [vmem:[%s1 + $0x1e0] sm:$0xff]
        %v364 = vld [vmem:[%s1 + $0x1e8] sm:$0xff]
        %v365 = vld [vmem:[%s1 + $0x1f0] sm:$0xff]
        %v366 = vld [vmem:[%s1 + $0x1f8] sm:$0xff]
        %v367 = vld [vmem:[%s1 + $0x200] sm:$0xff]
        %v368 = vld [vmem:[%s1 + $0x208] sm:$0xff]
        %v369 = vld [vmem:[%s1 + $0x210] sm:$0xff]
        %v370 = vld [vmem:[%s1 + $0x218] sm:$0xff]
        %v371 = vld [vmem:[%s1 + $0x220] sm:$0xff]
        %v372 = vld [vmem:[%s1 + $0x228] sm:$0xff]
        %v373 = vld [vmem:[%s1 + $0x230] sm:$0xff]
        %v374 = vld [vmem:[%s1 + $0x238] sm:$0xff]
        %v375 = vld [vmem:[%s1 + $0x240] sm:$0xff]
        %v376 = vld [vmem:[%s1 + $0x248] sm:$0xff]
        %v377 = vld [vmem:[%s1 + $0x250] sm:$0xff]
        %v378 = vld [vmem:[%s1 + $0x258] sm:$0xff]
        %v379 = vld [vmem:[%s1 + $0x260] sm:$0xff]
        %v380 = vld [vmem:[%s1 + $0x268] sm:$0xff]
        %v381 = vld [vmem:[%s1 + $0x270] sm:$0xff]
        %v382 = vld [vmem:[%s1 + $0x278] sm:$0xff]
        %v383 = vld [vmem:[%s1 + $0x280] sm:$0xff]
        %v384 = vld [vmem:[%s1 + $0x288] sm:$0xff]
        %v385 = vld [vmem:[%s1 + $0x290] sm:$0xff]
        %v386 = vld [vmem:[%s1 + $0x298] sm:$0xff]
        %v387 = vld [vmem:[%s1 + $0x2a0] sm:$0xff]
        %v388 = vld [vmem:[%s1 + $0x2a8] sm:$0xff]
        %v389 = vld [vmem:[%s1 + $0x2b0] sm:$0xff]
        %v390 = vld [vmem:[%s1 + $0x2b8] sm:$0xff]
        %v391 = vld [vmem:[%s1 + $0x2c0] sm:$0xff]
        %v392 = vld [vmem:[%s1 + $0x2c8] sm:$0xff]
        %v393 = vld [vmem:[%s1 + $0x2d0] sm:$0xff]
        %v394 = vld [vmem:[%s1 + $0x2d8] sm:$0xff]
        %v395 = vld [vmem:[%s1 + $0x2e0] sm:$0xff]
        %v396 = vld [vmem:[%s1 + $0x2e8] sm:$0xff]
        %v397 = vld [vmem:[%s1 + $0x2f0] sm:$0xff]
        %v398 = vld [vmem:[%s1 + $0x2f8] sm:$0xff]
        %v399 = vld [vmem:[%s1 + $0x300] sm:$0xff]
        %v400 = vld [vmem:[%s1 + $0x308] sm:$0xff]
        %v401 = vld [vmem:[%s1 + $0x310] sm:$0xff]
        %v402 = vld [vmem:[%s1 + $0x318] sm:$0xff]
        %v403 = vld [vmem:[%s1 + $0x320] sm:$0xff]
        %v404 = vld [vmem:[%s1 + $0x328] sm:$0xff]
        %v405 = vld [vmem:[%s1 + $0x330] sm:$0xff]
        %v406 = vld [vmem:[%s1 + $0x338] sm:$0xff]
        %v407 = vld [vmem:[%s1 + $0x340] sm:$0xff]
        %v408 = vld [vmem:[%s1 + $0x348] sm:$0xff]
        %v409 = vld [vmem:[%s1 + $0x350] sm:$0xff]
        %v410 = vld [vmem:[%s1 + $0x358] sm:$0xff]
        %v411 = vld [vmem:[%s1 + $0x360] sm:$0xff]
        %v412 = vld [vmem:[%s1 + $0x368] sm:$0xff]
        %v413 = vld [vmem:[%s1 + $0x370] sm:$0xff]
        %v414 = vld [vmem:[%s1 + $0x378] sm:$0xff]
        %v415 = vld [vmem:[%s1 + $0x380] sm:$0xff]
        %v416 = vld [vmem:[%s1 + $0x388] sm:$0xff]
        %v417 = vld [vmem:[%s1 + $0x390] sm:$0xff]
        %v418 = vld [vmem:[%s1 + $0x398] sm:$0xff]
        %v419 = vld [vmem:[%s1 + $0x3a0] sm:$0xff]
        %v420 = vld [vmem:[%s1 + $0x3a8] sm:$0xff]
        %v421 = vld [vmem:[%s1 + $0x3b0] sm:$0xff]
        %v422 = vld [vmem:[%s1 + $0x3b8] sm:$0xff]
        %v423 = vld [vmem:[%s1 + $0x3c0] sm:$0xff]
        %v424 = vld [vmem:[%s1 + $0x3c8] sm:$0xff]
        %v425 = vld [vmem:[%s1 + $0x3d0] sm:$0xff]
        %v426 = vld [vmem:[%s1 + $0x3d8] sm:$0xff]
        %v427 = vld [vmem:[%s1 + $0x3e0] sm:$0xff]
        %v428 = vld [vmem:[%s1 + $0x3e8] sm:$0xff]
        %v429 = vld [vmem:[%s1 + $0x3f0] sm:$0xff]
        %v430 = vld [vmem:[%s1 + $0x3f8] sm:$0xff]
        %v431 = vld [vmem:[%s1 + $0x400] sm:$0xff]
        %v432 = vld [vmem:[%s1 + $0x408] sm:$0xff]
        %v433 = vld [vmem:[%s1 + $0x410] sm:$0xff]
        %v434 = vld [vmem:[%s1 + $0x418] sm:$0xff]
        %v435 = vld [vmem:[%s1 + $0x420] sm:$0xff]
        %v436 = vld [vmem:[%s1 + $0x428] sm:$0xff]
        %v437 = vld [vmem:[%s1 + $0x430] sm:$0xff]
        %v438 = vld [vmem:[%s1 + $0x438] sm:$0xff]
        %v439 = vld [vmem:[%s1 + $0x440] sm:$0xff]
        %v440 = vld [vmem:[%s1 + $0x448] sm:$0xff]
        %v441 = vld [vmem:[%s1 + $0x450] sm:$0xff]
        %v442 = vld [vmem:[%s1 + $0x458] sm:$0xff]
        %v443 = vld [vmem:[%s1 + $0x460] sm:$0xff]
        %v444 = vld [vmem:[%s1 + $0x468] sm:$0xff]
        %v445 = vld [vmem:[%s1 + $0x470] sm:$0xff]
        %v446 = vld [vmem:[%s1 + $0x478] sm:$0xff]
        %v447 = vld [vmem:[%s1 + $0x480] sm:$0xff]
        %v448 = vld [vmem:[%s1 + $0x488] sm:$0xff]
        %v449 = vld [vmem:[%s1 + $0x490] sm:$0xff]
        %v450 = vld [vmem:[%s1 + $0x498] sm:$0xff]
        %v451 = vld [vmem:[%s1 + $0x4a0] sm:$0xff]
        %v452 = vld [vmem:[%s1 + $0x4a8] sm:$0xff]
        %v453 = vld [vmem:[%s1 + $0x4b0] sm:$0xff]
        %v454 = vld [vmem:[%s1 + $0x4b8] sm:$0xff]
        %v455 = vld [vmem:[%s1 + $0x4c0] sm:$0xff]
        %v456 = vld [vmem:[%s1 + $0x4c8] sm:$0xff]
        %v457 = vld [vmem:[%s1 + $0x4d0] sm:$0xff]
        %v458 = vld [vmem:[%s1 + $0x4d8] sm:$0xff]
        %v459 = vld [vmem:[%s1 + $0x4e0] sm:$0xff]
        %v460 = vld [vmem:[%s1 + $0x4e8] sm:$0xff]
        %v461 = vld [vmem:[%s1 + $0x4f0] sm:$0xff]
        %v462 = vld [vmem:[%s1 + $0x4f8] sm:$0xff]
        %v463 = vld [vmem:[%s1 + $0x500] sm:$0xff]
        %v464 = vld [vmem:[%s1 + $0x508] sm:$0xff]
        %v465 = vld [vmem:[%s1 + $0x510] sm:$0xff]
        %v466 = vld [vmem:[%s1 + $0x518] sm:$0xff]
        %v467 = vld [vmem:[%s1 + $0x520] sm:$0xff]
        %v468 = vld [vmem:[%s1 + $0x528] sm:$0xff]
        %v469 = vld [vmem:[%s1 + $0x530] sm:$0xff]
        %v470 = vld [vmem:[%s1 + $0x538] sm:$0xff]
        %v471 = vld [vmem:[%s1 + $0x540] sm:$0xff]
        %v472 = vld [vmem:[%s1 + $0x548] sm:$0xff]
        %v473 = vld [vmem:[%s1 + $0x550] sm:$0xff]
        %v474 = vld [vmem:[%s1 + $0x558] sm:$0xff]
        %v475 = vld [vmem:[%s1 + $0x560] sm:$0xff]
        %v476 = vld [vmem:[%s1 + $0x568] sm:$0xff]
        %v477 = vld [vmem:[%s1 + $0x570] sm:$0xff]
        %v478 = vld [vmem:[%s1 + $0x578] sm:$0xff]
        %v479 = vld [vmem:[%s1 + $0x580] sm:$0xff]
        %v480 = vld [vmem:[%s1 + $0x588] sm:$0xff]
        %v481 = vld [vmem:[%s1 + $0x590] sm:$0xff]
        %v482 = vld [vmem:[%s1 + $0x598] sm:$0xff]
        %v483 = vld [vmem:[%s1 + $0x5a0] sm:$0xff]
        %v484 = vld [vmem:[%s1 + $0x5a8] sm:$0xff]
        %v485 = vld [vmem:[%s1 + $0x5b0] sm:$0xff]
        %v486 = vld [vmem:[%s1 + $0x5b8] sm:$0xff]
        %v487 = vld [vmem:[%s1 + $0x5c0] sm:$0xff]
        %v488 = vld [vmem:[%s1 + $0x5c8] sm:$0xff]
        %v489 = vld [vmem:[%s1 + $0x5d0] sm:$0xff]
        %v490 = vld [vmem:[%s1 + $0x5d8] sm:$0xff]
        %v491 = vld [vmem:[%s1 + $0x5e0] sm:$0xff]
        %v492 = vld [vmem:[%s1 + $0x5e8] sm:$0xff]
        %v493 = vld [vmem:[%s1 + $0x5f0] sm:$0xff]
        %v494 = vld [vmem:[%s1 + $0x5f8] sm:$0xff]
        %v495 = vld [vmem:[%s1 + $0x600] sm:$0xff]
        %v496 = vld [vmem:[%s1 + $0x608] sm:$0xff]
        %v497 = vld [vmem:[%s1 + $0x610] sm:$0xff]
        %v498 = vld [vmem:[%s1 + $0x618] sm:$0xff]
        %v499 = vld [vmem:[%s1 + $0x620] sm:$0xff]
        %v500 = vld [vmem:[%s1 + $0x628] sm:$0xff]
        %v501 = vld [vmem:[%s1 + $0x630] sm:$0xff]
        %v502 = vld [vmem:[%s1 + $0x638] sm:$0xff]
        %v503 = vld [vmem:[%s1 + $0x640] sm:$0xff]
        %v504 = vld [vmem:[%s1 + $0x648] sm:$0xff]
        %v505 = vld [vmem:[%s1 + $0x650] sm:$0xff]
        %v506 = vld [vmem:[%s1 + $0x658] sm:$0xff]
        %v507 = vld [vmem:[%s1 + $0x660] sm:$0xff]
        %v508 = vld [vmem:[%s1 + $0x668] sm:$0xff]
        %v509 = vld [vmem:[%s1 + $0x670] sm:$0xff]
        %v510 = vld [vmem:[%s1 + $0x678] sm:$0xff]
        %v511 = vld [vmem:[%s1 + $0x680] sm:$0xff]
        %v512 = vld [vmem:[%s1 + $0x688] sm:$0xff]
        %v513 = vld [vmem:[%s1 + $0x690] sm:$0xff]
        %v514 = vld [vmem:[%s1 + $0x698] sm:$0xff]
        %v515 = vld [vmem:[%s1 + $0x6a0] sm:$0xff]
        %v516 = vld [vmem:[%s1 + $0x6a8] sm:$0xff]
        %v517 = vld [vmem:[%s1 + $0x6b0] sm:$0xff]
        %v518 = vld [vmem:[%s1 + $0x6b8] sm:$0xff]
        %v519 = vld [vmem:[%s1 + $0x6c0] sm:$0xff]
        %v520 = vld [vmem:[%s1 + $0x6c8] sm:$0xff]
        %v521 = vld [vmem:[%s1 + $0x6d0] sm:$0xff]
        %v522 = vld [vmem:[%s1 + $0x6d8] sm:$0xff]
        %v523 = vld [vmem:[%s1 + $0x6e0] sm:$0xff]
        %v524 = vld [vmem:[%s1 + $0x6e8] sm:$0xff]
        %v525 = vld [vmem:[%s1 + $0x6f0] sm:$0xff]
        %v526 = vld [vmem:[%s1 + $0x6f8] sm:$0xff]
        %v527 = vld [vmem:[%s1 + $0x700] sm:$0xff]
        %v528 = vld [vmem:[%s1 + $0x708] sm:$0xff]
        %v529 = vld [vmem:[%s1 + $0x710] sm:$0xff]
        %v530 = vld [vmem:[%s1 + $0x718] sm:$0xff]
        %v531 = vld [vmem:[%s1 + $0x720] sm:$0xff]
        %v532 = vld [vmem:[%s1 + $0x728] sm:$0xff]
        %v533 = vld [vmem:[%s1 + $0x730] sm:$0xff]
        %v534 = vld [vmem:[%s1 + $0x738] sm:$0xff]
        %v535 = vld [vmem:[%s1 + $0x740] sm:$0xff]
        %v536 = vld [vmem:[%s1 + $0x748] sm:$0xff]
        %v537 = vld [vmem:[%s1 + $0x750] sm:$0xff]
        %v538 = vld [vmem:[%s1 + $0x758] sm:$0xff]
        %v539 = vld [vmem:[%s1 + $0x760] sm:$0xff]
        %v540 = vld [vmem:[%s1 + $0x768] sm:$0xff]
        %v541 = vld [vmem:[%s1 + $0x770] sm:$0xff]
        %v542 = vld [vmem:[%s1 + $0x778] sm:$0xff]
        %v543 = vld [vmem:[%s1 + $0x780] sm:$0x3]
        %v544 = vld [vmem:[%s1 + $0x788] sm:$0x3]
        %v545 = vld [vmem:[%s2] sm:$0x3]
        %v547 = vlaneseq
        %v548 = vshrl.u32 %v547, 7
        %v549 = vsub.s32 0, %v548
        %v550 = vrot.slane %v545, %v549
        %v551 = vlaneseq
        %v552 = vshrl.u32 %v551, 7
        %v553 = vsub.s32 1, %v552
        %v554 = vrot.slane %v545, %v553
        %vm557 = vcmask 539648
        %v559 = vsel %vm557, %v182, 0
        %v562 = vsel %vm557, %v190, 0
        %v565 = vsel %vm557, %v198, 0
        %v568 = vsel %vm557, %v206, 0
        %v571 = vsel %vm557, %v214, 0
        %v574 = vsel %vm557, %v222, 0
        %v577 = vsel %vm557, %v230, 0
        %v580 = vsel %vm557, %v238, 0
        %v583 = vsel %vm557, %v246, 0
        %v586 = vsel %vm557, %v254, 0
        %v589 = vsel %vm557, %v262, 0
        %v592 = vsel %vm557, %v270, 0
        %v595 = vsel %vm557, %v278, 0
        %v598 = vsel %vm557, %v286, 0
        %v601 = vsel %vm557, %v294, 0
        %v604 = vsel %vm557, %v302, 0
        %vm606 = vcmask 1041408
        %v608 = vsel %vm606, %v543, 0
        %v611 = vsel %vm606, %v544, 0
        %613 = vmatprep.subr.mxu0 %v304
        %614 = vmatpush1.msra.mxu0 %v303
        %615 = vmatprep.subr.mxu0 %v306
        %616 = vmatpush1.msra.mxu0 %v305
        %617 = vmatprep.subr.mxu0 %v308
        %618 = vmatpush1.msra.mxu0 %v307
        %619 = vmatprep.subr.mxu0 %v310
        %620 = vmatpush1.msra.mxu0 %v309
        %621 = vmatprep.subr.mxu0 %v312
        %622 = vmatpush1.msra.mxu0 %v311
        %623 = vmatprep.subr.mxu0 %v314
        %624 = vmatpush1.msra.mxu0 %v313
        %625 = vmatprep.subr.mxu0 %v316
        %626 = vmatpush1.msra.mxu0 %v315
        %627 = vmatprep.subr.mxu0 %v318
        %628 = vmatpush1.msra.mxu0 %v317
        %629 = vmatprep.subr.mxu0 %v320
        %630 = vmatpush1.msra.mxu0 %v319
        %631 = vmatprep.subr.mxu0 %v322
        %632 = vmatpush1.msra.mxu0 %v321
        %633 = vmatprep.subr.mxu0 %v324
        %634 = vmatpush1.msra.mxu0 %v323
        %635 = vmatprep.subr.mxu0 %v326
        %636 = vmatpush1.msra.mxu0 %v325
        %637 = vmatprep.subr.mxu0 %v328
        %638 = vmatpush1.msra.mxu0 %v327
        %639 = vmatprep.subr.mxu0 %v330
        %640 = vmatpush1.msra.mxu0 %v329
        %641 = vmatprep.subr.mxu0 %v332
        %642 = vmatpush1.msra.mxu0 %v331
        %643 = vmatprep.subr.mxu0 %v334
        %644 = vmatpush1.msra.mxu0 %v333
        %645 = vmatprep.subr.mxu0 %v336
        %646 = vmatpush1.msra.mxu0 %v335
        %647 = vmatprep.subr.mxu0 %v338
        %648 = vmatpush1.msra.mxu0 %v337
        %649 = vmatprep.subr.mxu0 %v340
        %650 = vmatpush1.msra.mxu0 %v339
        %651 = vmatprep.subr.mxu0 %v342
        %652 = vmatpush1.msra.mxu0 %v341
        %653 = vmatprep.subr.mxu0 %v344
        %654 = vmatpush1.msra.mxu0 %v343
        %655 = vmatprep.subr.mxu0 %v346
        %656 = vmatpush1.msra.mxu0 %v345
        %657 = vmatprep.subr.mxu0 %v348
        %658 = vmatpush1.msra.mxu0 %v347
        %659 = vmatprep.subr.mxu0 %v350
        %660 = vmatpush1.msra.mxu0 %v349
        %661 = vmatprep.subr.mxu0 %v352
        %662 = vmatpush1.msra.mxu0 %v351
        %663 = vmatprep.subr.mxu0 %v354
        %664 = vmatpush1.msra.mxu0 %v353
        %665 = vmatprep.subr.mxu0 %v356
        %666 = vmatpush1.msra.mxu0 %v355
        %667 = vmatprep.subr.mxu0 %v358
        %668 = vmatpush1.msra.mxu0 %v357
        %669 = vmatprep.subr.mxu0 %v360
        %670 = vmatpush1.msra.mxu0 %v359
        %671 = vmatprep.subr.mxu0 %v362
        %672 = vmatpush1.msra.mxu0 %v361
        %673 = vmatprep.subr.mxu0 %v364
        %674 = vmatpush1.msra.mxu0 %v363
        %675 = vmatprep.subr.mxu0 %v366
        %676 = vmatpush1.msra.mxu0 %v365
        %677 = vmatprep.mubr.f32.mxu0 %v176
        %678 = vmatmul.mubr.f32.gmra.mrb[0].mxu0 %v175
        %v679 = vpop.f32.mrb[0].mxu0
        %v680 = vadd.f32 %v550, %v679
        %v681 = vpop.f32.mrb[0].mxu0
        %v682 = vadd.f32 %v554, %v681
        %683 = vmatprep.mubr.f32.mxu0 %v184
        %684 = vmatmul.mubr.f32.gmra.mrb[0].mxu0 %v183
        %v685 = vpop.f32.mrb[0].mxu0
        %v686 = vadd.f32 %v550, %v685
        %v687 = vpop.f32.mrb[0].mxu0
        %v688 = vadd.f32 %v554, %v687
        %689 = vmatprep.mubr.f32.mxu0 %v192
        %690 = vmatmul.mubr.f32.gmra.mrb[0].mxu0 %v191
        %v691 = vpop.f32.mrb[0].mxu0
        %v692 = vadd.f32 %v550, %v691
        %v693 = vpop.f32.mrb[0].mxu0
        %v694 = vadd.f32 %v554, %v693
        %695 = vmatprep.mubr.f32.mxu0 %v200
        %696 = vmatmul.mubr.f32.gmra.mrb[0].mxu0 %v199
        %v697 = vpop.f32.mrb[0].mxu0
        %v698 = vadd.f32 %v550, %v697
        %v699 = vpop.f32.mrb[0].mxu0
        %v700 = vadd.f32 %v554, %v699
        %701 = vmatprep.mubr.f32.mxu0 %v208
        %702 = vmatmul.mubr.f32.gmra.mrb[0].mxu0 %v207
        %v703 = vpop.f32.mrb[0].mxu0
        %v704 = vadd.f32 %v550, %v703
        %v705 = vpop.f32.mrb[0].mxu0
        %v706 = vadd.f32 %v554, %v705
        %707 = vmatprep.mubr.f32.mxu0 %v216
        %708 = vmatmul.mubr.f32.gmra.mrb[0].mxu0 %v215
        %v709 = vpop.f32.mrb[0].mxu0
        %v710 = vadd.f32 %v550, %v709
        %v711 = vpop.f32.mrb[0].mxu0
        %v712 = vadd.f32 %v554, %v711
        %713 = vmatprep.mubr.f32.mxu0 %v224
        %714 = vmatmul.mubr.f32.gmra.mrb[0].mxu0 %v223
        %v715 = vpop.f32.mrb[0].mxu0
        %v716 = vadd.f32 %v550, %v715
        %v717 = vpop.f32.mrb[0].mxu0
        %v718 = vadd.f32 %v554, %v717
        %719 = vmatprep.mubr.f32.mxu0 %v232
        %720 = vmatmul.mubr.f32.gmra.mrb[0].mxu0 %v231
        %v721 = vpop.f32.mrb[0].mxu0
        %v722 = vadd.f32 %v550, %v721
        %v723 = vpop.f32.mrb[0].mxu0
        %v724 = vadd.f32 %v554, %v723
        %725 = vmatprep.mubr.f32.mxu0 %v240
        %726 = vmatmul.mubr.f32.gmra.mrb[0].mxu0 %v239
        %v727 = vpop.f32.mrb[0].mxu0
        %v728 = vadd.f32 %v550, %v727
        %v729 = vpop.f32.mrb[0].mxu0
        %v730 = vadd.f32 %v554, %v729
        %731 = vmatprep.mubr.f32.mxu0 %v248
        %732 = vmatmul.mubr.f32.gmra.mrb[0].mxu0 %v247
        %v733 = vpop.f32.mrb[0].mxu0
        %v734 = vadd.f32 %v550, %v733
        %v735 = vpop.f32.mrb[0].mxu0
        %v736 = vadd.f32 %v554, %v735
        %737 = vmatprep.mubr.f32.mxu0 %v256
        %738 = vmatmul.mubr.f32.gmra.mrb[0].mxu0 %v255
        %v739 = vpop.f32.mrb[0].mxu0
        %v740 = vadd.f32 %v550, %v739
        %v741 = vpop.f32.mrb[0].mxu0
        %v742 = vadd.f32 %v554, %v741
        %743 = vmatprep.mubr.f32.mxu0 %v264
        %744 = vmatmul.mubr.f32.gmra.mrb[0].mxu0 %v263
        %v745 = vpop.f32.mrb[0].mxu0
        %v746 = vadd.f32 %v550, %v745
        %v747 = vpop.f32.mrb[0].mxu0
        %v748 = vadd.f32 %v554, %v747
        %749 = vmatprep.mubr.f32.mxu0 %v272
        %750 = vmatmul.mubr.f32.gmra.mrb[0].mxu0 %v271
        %v751 = vpop.f32.mrb[0].mxu0
        %v752 = vadd.f32 %v550, %v751
        %v753 = vpop.f32.mrb[0].mxu0
        %v754 = vadd.f32 %v554, %v753
        %755 = vmatprep.mubr.f32.mxu0 %v280
        %756 = vmatmul.mubr.f32.gmra.mrb[0].mxu0 %v279
        %v757 = vpop.f32.mrb[0].mxu0
        %v758 = vadd.f32 %v550, %v757
        %v759 = vpop.f32.mrb[0].mxu0
        %v760 = vadd.f32 %v554, %v759
        %761 = vmatprep.mubr.f32.mxu0 %v288
        %762 = vmatmul.mubr.f32.gmra.mrb[0].mxu0 %v287
        %v763 = vpop.f32.mrb[0].mxu0
        %v764 = vadd.f32 %v550, %v763
        %v765 = vpop.f32.mrb[0].mxu0
        %v766 = vadd.f32 %v554, %v765
        %767 = vmatprep.mubr.f32.mxu0 %v296
        %768 = vmatmul.mubr.f32.gmra.mrb[0].mxu0 %v295
        %v769 = vpop.f32.mrb[0].mxu0
        %v770 = vadd.f32 %v550, %v769
        %v771 = vpop.f32.mrb[0].mxu0
        %v772 = vadd.f32 %v554, %v771
        %773 = vdwg.mxu0
        %774 = vmatprep.subr.mxu0 %v368
        %775 = vmatpush1.msra.mxu0 %v367
        %776 = vmatprep.subr.mxu0 %v370
        %777 = vmatpush1.msra.mxu0 %v369
        %778 = vmatprep.subr.mxu0 %v372
        %779 = vmatpush1.msra.mxu0 %v371
        %780 = vmatprep.subr.mxu0 %v374
        %781 = vmatpush1.msra.mxu0 %v373
        %782 = vmatprep.subr.mxu0 %v376
        %783 = vmatpush1.msra.mxu0 %v375
        %784 = vmatprep.subr.mxu0 %v378
        %785 = vmatpush1.msra.mxu0 %v377
        %786 = vmatprep.subr.mxu0 %v380
        %787 = vmatpush1.msra.mxu0 %v379
        %788 = vmatprep.subr.mxu0 %v382
        %789 = vmatpush1.msra.mxu0 %v381
        %790 = vmatprep.subr.mxu0 %v384
        %791 = vmatpush1.msra.mxu0 %v383
        %792 = vmatprep.subr.mxu0 %v386
        %793 = vmatpush1.msra.mxu0 %v385
        %794 = vmatprep.subr.mxu0 %v388
        %795 = vmatpush1.msra.mxu0 %v387
        %796 = vmatprep.subr.mxu0 %v390
        %797 = vmatpush1.msra.mxu0 %v389
        %798 = vmatprep.subr.mxu0 %v392
        %799 = vmatpush1.msra.mxu0 %v391
        %800 = vmatprep.subr.mxu0 %v394
        %801 = vmatpush1.msra.mxu0 %v393
        %802 = vmatprep.subr.mxu0 %v396
        %803 = vmatpush1.msra.mxu0 %v395
        %804 = vmatprep.subr.mxu0 %v398
        %805 = vmatpush1.msra.mxu0 %v397
        %806 = vmatprep.subr.mxu0 %v400
        %807 = vmatpush1.msra.mxu0 %v399
        %808 = vmatprep.subr.mxu0 %v402
        %809 = vmatpush1.msra.mxu0 %v401
        %810 = vmatprep.subr.mxu0 %v404
        %811 = vmatpush1.msra.mxu0 %v403
        %812 = vmatprep.subr.mxu0 %v406
        %813 = vmatpush1.msra.mxu0 %v405
        %814 = vmatprep.subr.mxu0 %v408
        %815 = vmatpush1.msra.mxu0 %v407
        %816 = vmatprep.subr.mxu0 %v410
        %817 = vmatpush1.msra.mxu0 %v409
        %818 = vmatprep.subr.mxu0 %v412
        %819 = vmatpush1.msra.mxu0 %v411
        %820 = vmatprep.subr.mxu0 %v414
        %821 = vmatpush1.msra.mxu0 %v413
        %822 = vmatprep.subr.mxu0 %v416
        %823 = vmatpush1.msra.mxu0 %v415
        %824 = vmatprep.subr.mxu0 %v418
        %825 = vmatpush1.msra.mxu0 %v417
        %826 = vmatprep.subr.mxu0 %v420
        %827 = vmatpush1.msra.mxu0 %v419
        %828 = vmatprep.subr.mxu0 %v422
        %829 = vmatpush1.msra.mxu0 %v421
        %830 = vmatprep.subr.mxu0 %v424
        %831 = vmatpush1.msra.mxu0 %v423
        %832 = vmatprep.subr.mxu0 %v426
        %833 = vmatpush1.msra.mxu0 %v425
        %834 = vmatprep.subr.mxu0 %v428
        %835 = vmatpush1.msra.mxu0 %v427
        %836 = vmatprep.subr.mxu0 %v430
        %837 = vmatpush1.msra.mxu0 %v429
        %838 = vmatprep.mubr.f32.mxu0 %v178
        %839 = vmatmul.mubr.f32.gmra.mrb[0].mxu0 %v177
        %v840 = vpop.f32.mrb[0].mxu0
        %v841 = vadd.f32 %v680, %v840
        %v842 = vpop.f32.mrb[0].mxu0
        %v843 = vadd.f32 %v682, %v842
        %844 = vmatprep.mubr.f32.mxu0 %v186
        %845 = vmatmul.mubr.f32.gmra.mrb[0].mxu0 %v185
        %v846 = vpop.f32.mrb[0].mxu0
        %v847 = vadd.f32 %v686, %v846
        %v848 = vpop.f32.mrb[0].mxu0
        %v849 = vadd.f32 %v688, %v848
        %850 = vmatprep.mubr.f32.mxu0 %v194
        %851 = vmatmul.mubr.f32.gmra.mrb[0].mxu0 %v193
        %v852 = vpop.f32.mrb[0].mxu0
        %v853 = vadd.f32 %v692, %v852
        %v854 = vpop.f32.mrb[0].mxu0
        %v855 = vadd.f32 %v694, %v854
        %856 = vmatprep.mubr.f32.mxu0 %v202
        %857 = vmatmul.mubr.f32.gmra.mrb[0].mxu0 %v201
        %v858 = vpop.f32.mrb[0].mxu0
        %v859 = vadd.f32 %v698, %v858
        %v860 = vpop.f32.mrb[0].mxu0
        %v861 = vadd.f32 %v700, %v860
        %862 = vmatprep.mubr.f32.mxu0 %v210
        %863 = vmatmul.mubr.f32.gmra.mrb[0].mxu0 %v209
        %v864 = vpop.f32.mrb[0].mxu0
        %v865 = vadd.f32 %v704, %v864
        %v866 = vpop.f32.mrb[0].mxu0
        %v867 = vadd.f32 %v706, %v866
        %868 = vmatprep.mubr.f32.mxu0 %v218
        %869 = vmatmul.mubr.f32.gmra.mrb[0].mxu0 %v217
        %v870 = vpop.f32.mrb[0].mxu0
        %v871 = vadd.f32 %v710, %v870
        %v872 = vpop.f32.mrb[0].mxu0
        %v873 = vadd.f32 %v712, %v872
        %874 = vmatprep.mubr.f32.mxu0 %v226
        %875 = vmatmul.mubr.f32.gmra.mrb[0].mxu0 %v225
        %v876 = vpop.f32.mrb[0].mxu0
        %v877 = vadd.f32 %v716, %v876
        %v878 = vpop.f32.mrb[0].mxu0
        %v879 = vadd.f32 %v718, %v878
        %880 = vmatprep.mubr.f32.mxu0 %v234
        %881 = vmatmul.mubr.f32.gmra.mrb[0].mxu0 %v233
        %v882 = vpop.f32.mrb[0].mxu0
        %v883 = vadd.f32 %v722, %v882
        %v884 = vpop.f32.mrb[0].mxu0
        %v885 = vadd.f32 %v724, %v884
        %886 = vmatprep.mubr.f32.mxu0 %v242
        %887 = vmatmul.mubr.f32.gmra.mrb[0].mxu0 %v241
        %v888 = vpop.f32.mrb[0].mxu0
        %v889 = vadd.f32 %v728, %v888
        %v890 = vpop.f32.mrb[0].mxu0
        %v891 = vadd.f32 %v730, %v890
        %892 = vmatprep.mubr.f32.mxu0 %v250
        %893 = vmatmul.mubr.f32.gmra.mrb[0].mxu0 %v249
        %v894 = vpop.f32.mrb[0].mxu0
        %v895 = vadd.f32 %v734, %v894
        %v896 = vpop.f32.mrb[0].mxu0
        %v897 = vadd.f32 %v736, %v896
        %898 = vmatprep.mubr.f32.mxu0 %v258
        %899 = vmatmul.mubr.f32.gmra.mrb[0].mxu0 %v257
        %v900 = vpop.f32.mrb[0].mxu0
        %v901 = vadd.f32 %v740, %v900
        %v902 = vpop.f32.mrb[0].mxu0
        %v903 = vadd.f32 %v742, %v902
        %904 = vmatprep.mubr.f32.mxu0 %v266
        %905 = vmatmul.mubr.f32.gmra.mrb[0].mxu0 %v265
        %v906 = vpop.f32.mrb[0].mxu0
        %v907 = vadd.f32 %v746, %v906
        %v908 = vpop.f32.mrb[0].mxu0
        %v909 = vadd.f32 %v748, %v908
        %910 = vmatprep.mubr.f32.mxu0 %v274
        %911 = vmatmul.mubr.f32.gmra.mrb[0].mxu0 %v273
        %v912 = vpop.f32.mrb[0].mxu0
        %v913 = vadd.f32 %v752, %v912
        %v914 = vpop.f32.mrb[0].mxu0
        %v915 = vadd.f32 %v754, %v914
        %916 = vmatprep.mubr.f32.mxu0 %v282
        %917 = vmatmul.mubr.f32.gmra.mrb[0].mxu0 %v281
        %v918 = vpop.f32.mrb[0].mxu0
        %v919 = vadd.f32 %v758, %v918
        %v920 = vpop.f32.mrb[0].mxu0
        %v921 = vadd.f32 %v760, %v920
        %922 = vmatprep.mubr.f32.mxu0 %v290
        %923 = vmatmul.mubr.f32.gmra.mrb[0].mxu0 %v289
        %v924 = vpop.f32.mrb[0].mxu0
        %v925 = vadd.f32 %v764, %v924
        %v926 = vpop.f32.mrb[0].mxu0
        %v927 = vadd.f32 %v766, %v926
        %928 = vmatprep.mubr.f32.mxu0 %v298
        %929 = vmatmul.mubr.f32.gmra.mrb[0].mxu0 %v297
        %v930 = vpop.f32.mrb[0].mxu0
        %v931 = vadd.f32 %v770, %v930
        %v932 = vpop.f32.mrb[0].mxu0
        %v933 = vadd.f32 %v772, %v932
        %934 = vdwg.mxu0
        %935 = vmatprep.subr.mxu0 %v432
        %936 = vmatpush1.msra.mxu0 %v431
        %937 = vmatprep.subr.mxu0 %v434
        %938 = vmatpush1.msra.mxu0 %v433
        %939 = vmatprep.subr.mxu0 %v436
        %940 = vmatpush1.msra.mxu0 %v435
        %941 = vmatprep.subr.mxu0 %v438
        %942 = vmatpush1.msra.mxu0 %v437
        %943 = vmatprep.subr.mxu0 %v440
        %944 = vmatpush1.msra.mxu0 %v439
        %945 = vmatprep.subr.mxu0 %v442
        %946 = vmatpush1.msra.mxu0 %v441
        %947 = vmatprep.subr.mxu0 %v444
        %948 = vmatpush1.msra.mxu0 %v443
        %949 = vmatprep.subr.mxu0 %v446
        %950 = vmatpush1.msra.mxu0 %v445
        %951 = vmatprep.subr.mxu0 %v448
        %952 = vmatpush1.msra.mxu0 %v447
        %953 = vmatprep.subr.mxu0 %v450
        %954 = vmatpush1.msra.mxu0 %v449
        %955 = vmatprep.subr.mxu0 %v452
        %956 = vmatpush1.msra.mxu0 %v451
        %957 = vmatprep.subr.mxu0 %v454
        %958 = vmatpush1.msra.mxu0 %v453
        %959 = vmatprep.subr.mxu0 %v456
        %960 = vmatpush1.msra.mxu0 %v455
        %961 = vmatprep.subr.mxu0 %v458
        %962 = vmatpush1.msra.mxu0 %v457
        %963 = vmatprep.subr.mxu0 %v460
        %964 = vmatpush1.msra.mxu0 %v459
        %965 = vmatprep.subr.mxu0 %v462
        %966 = vmatpush1.msra.mxu0 %v461
        %967 = vmatprep.subr.mxu0 %v464
        %968 = vmatpush1.msra.mxu0 %v463
        %969 = vmatprep.subr.mxu0 %v466
        %970 = vmatpush1.msra.mxu0 %v465
        %971 = vmatprep.subr.mxu0 %v468
        %972 = vmatpush1.msra.mxu0 %v467
        %973 = vmatprep.subr.mxu0 %v470
        %974 = vmatpush1.msra.mxu0 %v469
        %975 = vmatprep.subr.mxu0 %v472
        %976 = vmatpush1.msra.mxu0 %v471
        %977 = vmatprep.subr.mxu0 %v474
        %978 = vmatpush1.msra.mxu0 %v473
        %979 = vmatprep.subr.mxu0 %v476
        %980 = vmatpush1.msra.mxu0 %v475
        %981 = vmatprep.subr.mxu0 %v478
        %982 = vmatpush1.msra.mxu0 %v477
        %983 = vmatprep.subr.mxu0 %v480
        %984 = vmatpush1.msra.mxu0 %v479
        %985 = vmatprep.subr.mxu0 %v482
        %986 = vmatpush1.msra.mxu0 %v481
        %987 = vmatprep.subr.mxu0 %v484
        %988 = vmatpush1.msra.mxu0 %v483
        %989 = vmatprep.subr.mxu0 %v486
        %990 = vmatpush1.msra.mxu0 %v485
        %991 = vmatprep.subr.mxu0 %v488
        %992 = vmatpush1.msra.mxu0 %v487
        %993 = vmatprep.subr.mxu0 %v490
        %994 = vmatpush1.msra.mxu0 %v489
        %995 = vmatprep.subr.mxu0 %v492
        %996 = vmatpush1.msra.mxu0 %v491
        %997 = vmatprep.subr.mxu0 %v494
        %998 = vmatpush1.msra.mxu0 %v493
        %999 = vmatprep.mubr.f32.mxu0 %v180
        %1000 = vmatmul.mubr.f32.gmra.mrb[0].mxu0 %v179
        %v1001 = vpop.f32.mrb[0].mxu0
        %v1002 = vadd.f32 %v841, %v1001
        %v1003 = vpop.f32.mrb[0].mxu0
        %v1004 = vadd.f32 %v843, %v1003
        %1005 = vmatprep.mubr.f32.mxu0 %v188
        %1006 = vmatmul.mubr.f32.gmra.mrb[0].mxu0 %v187
        %v1007 = vpop.f32.mrb[0].mxu0
        %v1008 = vadd.f32 %v847, %v1007
        %v1009 = vpop.f32.mrb[0].mxu0
        %v1010 = vadd.f32 %v849, %v1009
        %1011 = vmatprep.mubr.f32.mxu0 %v196
        %1012 = vmatmul.mubr.f32.gmra.mrb[0].mxu0 %v195
        %v1013 = vpop.f32.mrb[0].mxu0
        %v1014 = vadd.f32 %v853, %v1013
        %v1015 = vpop.f32.mrb[0].mxu0
        %v1016 = vadd.f32 %v855, %v1015
        %1017 = vmatprep.mubr.f32.mxu0 %v204
        %1018 = vmatmul.mubr.f32.gmra.mrb[0].mxu0 %v203
        %v1019 = vpop.f32.mrb[0].mxu0
        %v1020 = vadd.f32 %v859, %v1019
        %v1021 = vpop.f32.mrb[0].mxu0
        %v1022 = vadd.f32 %v861, %v1021
        %1023 = vmatprep.mubr.f32.mxu0 %v212
        %1024 = vmatmul.mubr.f32.gmra.mrb[0].mxu0 %v211
        %v1025 = vpop.f32.mrb[0].mxu0
        %v1026 = vadd.f32 %v865, %v1025
        %v1027 = vpop.f32.mrb[0].mxu0
        %v1028 = vadd.f32 %v867, %v1027
        %1029 = vmatprep.mubr.f32.mxu0 %v220
        %1030 = vmatmul.mubr.f32.gmra.mrb[0].mxu0 %v219
        %v1031 = vpop.f32.mrb[0].mxu0
        %v1032 = vadd.f32 %v871, %v1031
        %v1033 = vpop.f32.mrb[0].mxu0
        %v1034 = vadd.f32 %v873, %v1033
        %1035 = vmatprep.mubr.f32.mxu0 %v228
        %1036 = vmatmul.mubr.f32.gmra.mrb[0].mxu0 %v227
        %v1037 = vpop.f32.mrb[0].mxu0
        %v1038 = vadd.f32 %v877, %v1037
        %v1039 = vpop.f32.mrb[0].mxu0
        %v1040 = vadd.f32 %v879, %v1039
        %1041 = vmatprep.mubr.f32.mxu0 %v236
        %1042 = vmatmul.mubr.f32.gmra.mrb[0].mxu0 %v235
        %v1043 = vpop.f32.mrb[0].mxu0
        %v1044 = vadd.f32 %v883, %v1043
        %v1045 = vpop.f32.mrb[0].mxu0
        %v1046 = vadd.f32 %v885, %v1045
        %1047 = vmatprep.mubr.f32.mxu0 %v244
        %1048 = vmatmul.mubr.f32.gmra.mrb[0].mxu0 %v243
        %v1049 = vpop.f32.mrb[0].mxu0
        %v1050 = vadd.f32 %v889, %v1049
        %v1051 = vpop.f32.mrb[0].mxu0
        %v1052 = vadd.f32 %v891, %v1051
        %1053 = vmatprep.mubr.f32.mxu0 %v252
        %1054 = vmatmul.mubr.f32.gmra.mrb[0].mxu0 %v251
        %v1055 = vpop.f32.mrb[0].mxu0
        %v1056 = vadd.f32 %v895, %v1055
        %v1057 = vpop.f32.mrb[0].mxu0
        %v1058 = vadd.f32 %v897, %v1057
        %1059 = vmatprep.mubr.f32.mxu0 %v260
        %1060 = vmatmul.mubr.f32.gmra.mrb[0].mxu0 %v259
        %v1061 = vpop.f32.mrb[0].mxu0
        %v1062 = vadd.f32 %v901, %v1061
        %v1063 = vpop.f32.mrb[0].mxu0
        %v1064 = vadd.f32 %v903, %v1063
        %1065 = vmatprep.mubr.f32.mxu0 %v268
        %1066 = vmatmul.mubr.f32.gmra.mrb[0].mxu0 %v267
        %v1067 = vpop.f32.mrb[0].mxu0
        %v1068 = vadd.f32 %v907, %v1067
        %v1069 = vpop.f32.mrb[0].mxu0
        %v1070 = vadd.f32 %v909, %v1069
        %1071 = vmatprep.mubr.f32.mxu0 %v276
        %1072 = vmatmul.mubr.f32.gmra.mrb[0].mxu0 %v275
        %v1073 = vpop.f32.mrb[0].mxu0
        %v1074 = vadd.f32 %v913, %v1073
        %v1075 = vpop.f32.mrb[0].mxu0
        %v1076 = vadd.f32 %v915, %v1075
        %1077 = vmatprep.mubr.f32.mxu0 %v284
        %1078 = vmatmul.mubr.f32.gmra.mrb[0].mxu0 %v283
        %v1079 = vpop.f32.mrb[0].mxu0
        %v1080 = vadd.f32 %v919, %v1079
        %v1081 = vpop.f32.mrb[0].mxu0
        %v1082 = vadd.f32 %v921, %v1081
        %1083 = vmatprep.mubr.f32.mxu0 %v292
        %1084 = vmatmul.mubr.f32.gmra.mrb[0].mxu0 %v291
        %v1085 = vpop.f32.mrb[0].mxu0
        %v1086 = vadd.f32 %v925, %v1085
        %v1087 = vpop.f32.mrb[0].mxu0
        %v1088 = vadd.f32 %v927, %v1087
        %1089 = vmatprep.mubr.f32.mxu0 %v300
        %1090 = vmatmul.mubr.f32.gmra.mrb[0].mxu0 %v299
        %v1091 = vpop.f32.mrb[0].mxu0
        %v1092 = vadd.f32 %v931, %v1091
        %v1093 = vpop.f32.mrb[0].mxu0
        %v1094 = vadd.f32 %v933, %v1093
        %1095 = vdwg.mxu0
        %1096 = vmatprep.subr.mxu0 %v496
        %1097 = vmatpush1.msra.mxu0 %v495
        %1098 = vmatprep.subr.mxu0 %v498
        %1099 = vmatpush1.msra.mxu0 %v497
        %1100 = vmatprep.subr.mxu0 %v500
        %1101 = vmatpush1.msra.mxu0 %v499
        %1102 = vmatprep.subr.mxu0 %v502
        %1103 = vmatpush1.msra.mxu0 %v501
        %1104 = vmatprep.subr.mxu0 %v504
        %1105 = vmatpush1.msra.mxu0 %v503
        %1106 = vmatprep.subr.mxu0 %v506
        %1107 = vmatpush1.msra.mxu0 %v505
        %1108 = vmatprep.subr.mxu0 %v508
        %1109 = vmatpush1.msra.mxu0 %v507
        %1110 = vmatprep.subr.mxu0 %v510
        %1111 = vmatpush1.msra.mxu0 %v509
        %1112 = vmatprep.subr.mxu0 %v512
        %1113 = vmatpush1.msra.mxu0 %v511
        %1114 = vmatprep.subr.mxu0 %v514
        %1115 = vmatpush1.msra.mxu0 %v513
        %1116 = vmatprep.subr.mxu0 %v516
        %1117 = vmatpush1.msra.mxu0 %v515
        %1118 = vmatprep.subr.mxu0 %v518
        %1119 = vmatpush1.msra.mxu0 %v517
        %1120 = vmatprep.subr.mxu0 %v520
        %1121 = vmatpush1.msra.mxu0 %v519
        %1122 = vmatprep.subr.mxu0 %v522
        %1123 = vmatpush1.msra.mxu0 %v521
        %1124 = vmatprep.subr.mxu0 %v524
        %1125 = vmatpush1.msra.mxu0 %v523
        %1126 = vmatprep.subr.mxu0 %v526
        %1127 = vmatpush1.msra.mxu0 %v525
        %1128 = vmatprep.subr.mxu0 %v528
        %1129 = vmatpush1.msra.mxu0 %v527
        %1130 = vmatprep.subr.mxu0 %v530
        %1131 = vmatpush1.msra.mxu0 %v529
        %1132 = vmatprep.subr.mxu0 %v532
        %1133 = vmatpush1.msra.mxu0 %v531
        %1134 = vmatprep.subr.mxu0 %v534
        %1135 = vmatpush1.msra.mxu0 %v533
        %1136 = vmatprep.subr.mxu0 %v536
        %1137 = vmatpush1.msra.mxu0 %v535
        %1138 = vmatprep.subr.mxu0 %v538
        %1139 = vmatpush1.msra.mxu0 %v537
        %1140 = vmatprep.subr.mxu0 %v540
        %1141 = vmatpush1.msra.mxu0 %v539
        %1142 = vmatprep.subr.mxu0 %v542
        %1143 = vmatpush1.msra.mxu0 %v541
        %1144 = vmatprep.subr.mxu0 %v611
        %1145 = vmatpush1.msra.mxu0 %v608
        %1146 = vmatprep.subr.mxu0 0.0
        %1147 = vmatpush1.msra.mxu0 0.0
        %1148 = vmatprep.subr.mxu0 0.0
        %1149 = vmatpush1.msra.mxu0 0.0
        %1150 = vmatprep.subr.mxu0 0.0
        %1151 = vmatpush1.msra.mxu0 0.0
        %1152 = vmatprep.subr.mxu0 0.0
        %1153 = vmatpush1.msra.mxu0 0.0
        %1154 = vmatprep.subr.mxu0 0.0
        %1155 = vmatpush1.msra.mxu0 0.0
        %1156 = vmatprep.subr.mxu0 0.0
        %1157 = vmatpush1.msra.mxu0 0.0
        %1158 = vmatprep.subr.mxu0 0.0
        %1159 = vmatpush1.msra.mxu0 0.0
        %1160 = vmatprep.mubr.f32.mxu0 %v559
        %1161 = vmatmul.mubr.f32.gmra.mrb[0].mxu0 %v181
        %v1162 = vpop.f32.mrb[0].mxu0
        %v1163 = vadd.f32 %v1002, %v1162
        %v1164 = vpop.f32.mrb[0].mxu0
        %v1165 = vadd.f32 %v1004, %v1164
        %1166 = vmatprep.mubr.f32.mxu0 %v562
        %1167 = vmatmul.mubr.f32.gmra.mrb[0].mxu0 %v189
        %v1168 = vpop.f32.mrb[0].mxu0
        %v1169 = vadd.f32 %v1008, %v1168
        %v1170 = vpop.f32.mrb[0].mxu0
        %v1171 = vadd.f32 %v1010, %v1170
        %1172 = vmatprep.mubr.f32.mxu0 %v565
        %1173 = vmatmul.mubr.f32.gmra.mrb[0].mxu0 %v197
        %v1174 = vpop.f32.mrb[0].mxu0
        %v1175 = vadd.f32 %v1014, %v1174
        %v1176 = vpop.f32.mrb[0].mxu0
        %v1177 = vadd.f32 %v1016, %v1176
        %1178 = vmatprep.mubr.f32.mxu0 %v568
        %1179 = vmatmul.mubr.f32.gmra.mrb[0].mxu0 %v205
        %v1180 = vpop.f32.mrb[0].mxu0
        %v1181 = vadd.f32 %v1020, %v1180
        %v1182 = vpop.f32.mrb[0].mxu0
        %v1183 = vadd.f32 %v1022, %v1182
        %1184 = vmatprep.mubr.f32.mxu0 %v571
        %1185 = vmatmul.mubr.f32.gmra.mrb[0].mxu0 %v213
        %v1186 = vpop.f32.mrb[0].mxu0
        %v1187 = vadd.f32 %v1026, %v1186
        %v1188 = vpop.f32.mrb[0].mxu0
        %v1189 = vadd.f32 %v1028, %v1188
        %1190 = vmatprep.mubr.f32.mxu0 %v574
        %1191 = vmatmul.mubr.f32.gmra.mrb[0].mxu0 %v221
        %v1192 = vpop.f32.mrb[0].mxu0
        %v1193 = vadd.f32 %v1032, %v1192
        %v1194 = vpop.f32.mrb[0].mxu0
        %v1195 = vadd.f32 %v1034, %v1194
        %1196 = vmatprep.mubr.f32.mxu0 %v577
        %1197 = vmatmul.mubr.f32.gmra.mrb[0].mxu0 %v229
        %v1198 = vpop.f32.mrb[0].mxu0
        %v1199 = vadd.f32 %v1038, %v1198
        %v1200 = vpop.f32.mrb[0].mxu0
        %v1201 = vadd.f32 %v1040, %v1200
        %1202 = vmatprep.mubr.f32.mxu0 %v580
        %1203 = vmatmul.mubr.f32.gmra.mrb[0].mxu0 %v237
        %v1204 = vpop.f32.mrb[0].mxu0
        %v1205 = vadd.f32 %v1044, %v1204
        %v1206 = vpop.f32.mrb[0].mxu0
        %v1207 = vadd.f32 %v1046, %v1206
        %1208 = vmatprep.mubr.f32.mxu0 %v583
        %1209 = vmatmul.mubr.f32.gmra.mrb[0].mxu0 %v245
        %v1210 = vpop.f32.mrb[0].mxu0
        %v1211 = vadd.f32 %v1050, %v1210
        %v1212 = vpop.f32.mrb[0].mxu0
        %v1213 = vadd.f32 %v1052, %v1212
        %1214 = vmatprep.mubr.f32.mxu0 %v586
        %1215 = vmatmul.mubr.f32.gmra.mrb[0].mxu0 %v253
        %v1216 = vpop.f32.mrb[0].mxu0
        %v1217 = vadd.f32 %v1056, %v1216
        %v1218 = vpop.f32.mrb[0].mxu0
        %v1219 = vadd.f32 %v1058, %v1218
        %1220 = vmatprep.mubr.f32.mxu0 %v589
        %1221 = vmatmul.mubr.f32.gmra.mrb[0].mxu0 %v261
        %v1222 = vpop.f32.mrb[0].mxu0
        %v1223 = vadd.f32 %v1062, %v1222
        %v1224 = vpop.f32.mrb[0].mxu0
        %v1225 = vadd.f32 %v1064, %v1224
        %1226 = vmatprep.mubr.f32.mxu0 %v592
        %1227 = vmatmul.mubr.f32.gmra.mrb[0].mxu0 %v269
        %v1228 = vpop.f32.mrb[0].mxu0
        %v1229 = vadd.f32 %v1068, %v1228
        %v1230 = vpop.f32.mrb[0].mxu0
        %v1231 = vadd.f32 %v1070, %v1230
        %1232 = vmatprep.mubr.f32.mxu0 %v595
        %1233 = vmatmul.mubr.f32.gmra.mrb[0].mxu0 %v277
        %v1234 = vpop.f32.mrb[0].mxu0
        %v1235 = vadd.f32 %v1074, %v1234
        %v1236 = vpop.f32.mrb[0].mxu0
        %v1237 = vadd.f32 %v1076, %v1236
        %1238 = vmatprep.mubr.f32.mxu0 %v598
        %1239 = vmatmul.mubr.f32.gmra.mrb[0].mxu0 %v285
        %v1240 = vpop.f32.mrb[0].mxu0
        %v1241 = vadd.f32 %v1080, %v1240
        %v1242 = vpop.f32.mrb[0].mxu0
        %v1243 = vadd.f32 %v1082, %v1242
        %1244 = vmatprep.mubr.f32.mxu0 %v601
        %1245 = vmatmul.mubr.f32.gmra.mrb[0].mxu0 %v293
        %v1246 = vpop.f32.mrb[0].mxu0
        %v1247 = vadd.f32 %v1086, %v1246
        %v1248 = vpop.f32.mrb[0].mxu0
        %v1249 = vadd.f32 %v1088, %v1248
        %1250 = vmatprep.mubr.f32.mxu0 %v604
        %1251 = vmatmul.mubr.f32.gmra.mrb[0].mxu0 %v301
        %v1252 = vpop.f32.mrb[0].mxu0
        %v1253 = vadd.f32 %v1092, %v1252
        %v1254 = vpop.f32.mrb[0].mxu0
        %v1255 = vadd.f32 %v1094, %v1254
        %1256 = vdwg.mxu0
        %v1257 = vpack.c.bf16 %v1169, %v1163
        %v1258 = vpack.c.bf16 %v1171, %v1165
        %v1259 = vpack.c.bf16 %v1181, %v1175
        %v1260 = vpack.c.bf16 %v1183, %v1177
        %v1261 = vpack.c.bf16 %v1193, %v1187
        %v1262 = vpack.c.bf16 %v1195, %v1189
        %v1263 = vpack.c.bf16 %v1205, %v1199
        %v1264 = vpack.c.bf16 %v1207, %v1201
        %v1265 = vpack.c.bf16 %v1217, %v1211
        %v1266 = vpack.c.bf16 %v1219, %v1213
        %v1267 = vpack.c.bf16 %v1229, %v1223
        %v1268 = vpack.c.bf16 %v1231, %v1225
        %v1269 = vpack.c.bf16 %v1241, %v1235
        %v1270 = vpack.c.bf16 %v1243, %v1237
        %v1271 = vpack.c.bf16 %v1253, %v1247
        %v1272 = vpack.c.bf16 %v1255, %v1249
        %v1289 = vunpack.c.l.b16 %v1257
        %v1290 = vunpack.c.l.b16 %v1258
        %v1291 = vunpack.c.h.b16 %v1257
        %v1292 = vunpack.c.h.b16 %v1258
        %v1293 = vunpack.c.l.b16 %v1259
        %v1294 = vunpack.c.l.b16 %v1260
        %v1295 = vunpack.c.h.b16 %v1259
        %v1296 = vunpack.c.h.b16 %v1260
        %v1297 = vunpack.c.l.b16 %v1261
        %v1298 = vunpack.c.l.b16 %v1262
        %v1299 = vunpack.c.h.b16 %v1261
        %v1300 = vunpack.c.h.b16 %v1262
        %v1301 = vunpack.c.l.b16 %v1263
        %v1302 = vunpack.c.l.b16 %v1264
        %v1303 = vunpack.c.h.b16 %v1263
        %v1304 = vunpack.c.h.b16 %v1264
        %v1305 = vunpack.c.l.b16 %v1265
        %v1306 = vunpack.c.l.b16 %v1266
        %v1307 = vunpack.c.h.b16 %v1265
        %v1308 = vunpack.c.h.b16 %v1266
        %v1309 = vunpack.c.l.b16 %v1267
        %v1310 = vunpack.c.l.b16 %v1268
        %v1311 = vunpack.c.h.b16 %v1267
        %v1312 = vunpack.c.h.b16 %v1268
        %v1313 = vunpack.c.l.b16 %v1269
        %v1314 = vunpack.c.l.b16 %v1270
        %v1315 = vunpack.c.h.b16 %v1269
        %v1316 = vunpack.c.h.b16 %v1270
        %v1317 = vunpack.c.l.b16 %v1271
        %v1318 = vunpack.c.l.b16 %v1272
        %v1319 = vunpack.c.h.b16 %v1271
        %v1320 = vunpack.c.h.b16 %v1272
        %v1321 = vpack.c.b16 %v1290, %v1289
        %v1322 = vpack.c.b16 %v1292, %v1291
        %v1323 = vpack.c.b16 %v1294, %v1293
        %v1324 = vpack.c.b16 %v1296, %v1295
        %v1325 = vpack.c.b16 %v1298, %v1297
        %v1326 = vpack.c.b16 %v1300, %v1299
        %v1327 = vpack.c.b16 %v1302, %v1301
        %v1328 = vpack.c.b16 %v1304, %v1303
        %v1329 = vpack.c.b16 %v1306, %v1305
        %v1330 = vpack.c.b16 %v1308, %v1307
        %v1331 = vpack.c.b16 %v1310, %v1309
        %v1332 = vpack.c.b16 %v1312, %v1311
        %v1333 = vpack.c.b16 %v1314, %v1313
        %v1334 = vpack.c.b16 %v1316, %v1315
        %v1335 = vpack.c.b16 %v1318, %v1317
        %v1336 = vpack.c.b16 %v1320, %v1319
        %1353 = vst [vmem:[%s166] sm:$0xff] %v1321
        %1354 = vst [vmem:[%s166 + $0x8] sm:$0xff] %v1322
        %1355 = vst [vmem:[%s166 + $0x10] sm:$0xff] %v1323
        %1356 = vst [vmem:[%s166 + $0x18] sm:$0xff] %v1324
        %1357 = vst [vmem:[%s166 + $0x20] sm:$0xff] %v1325
        %1358 = vst [vmem:[%s166 + $0x28] sm:$0xff] %v1326
        %1359 = vst [vmem:[%s166 + $0x30] sm:$0xff] %v1327
        %1360 = vst [vmem:[%s166 + $0x38] sm:$0xff] %v1328
        %1361 = vst [vmem:[%s166 + $0x40] sm:$0xff] %v1329
        %1362 = vst [vmem:[%s166 + $0x48] sm:$0xff] %v1330
        %1363 = vst [vmem:[%s166 + $0x50] sm:$0xff] %v1331
        %1364 = vst [vmem:[%s166 + $0x58] sm:$0xff] %v1332
        %1365 = vst [vmem:[%s166 + $0x60] sm:$0xff] %v1333
        %1366 = vst [vmem:[%s166 + $0x68] sm:$0xff] %v1334
        %1367 = vst [vmem:[%s166 + $0x70] sm:$0xff] %v1335
        %1368 = vst [vmem:[%s166 + $0x78] sm:$0xff] %v1336
        %s1369 = sand.u32 %s93, 1
        %s1370 = scalar_lea.sflag [#allocation3], %s1369
        %s1371 = sand.u32 %s93, 1
        %s1372 = smul.addr %s1371, 128
        %s1373 = scalar_lea.vmem [#allocation2], %s1372
        // Predicated region
        $region33: #{tpu_custom_call.1} parent=31 // pred_check
          %p1374 = pneg %p103
        $region34: #{tpu_custom_call.1} parent=31 // pred_check_branch
          %1376 = sbr.rel (%p1374) target = $region36
        $region35: #{tpu_custom_call.1} parent=31 // pred_region
          %s1377 = smul.u32 16, %s17
          %s1379 = ssub.s32 2048, 2048
          %1380 = vsyncadd %s1370, %s1379
          %s1381 = smul.addr %s1377, 2
          %s1382 = smul.addr %s1381, 64
          %s1383 = scalar_lea.hbm %s3, %s1382
          %s1384 = sshll.u32 %s1373, 4
          %s1385 = int_to_ptr.vmem [resolvable:$true] %s1384
          %1390 = dma.vmem_to_hbm [thread:$0]  %s1385, 2048, %s1383, %s1370, 128, 128, 8
        $region36: #{tpu_custom_call.1} parent=31 // pred_fallthru
          _
      $region32: #{tpu_custom_call.1} parent=5 // pred_fallthru
        _
      %p1391 = scmp.le.s32.totalorder 2, %s12
      // Predicated region
      $region37: #{tpu_custom_call.1} parent=5 // pred_check
        %p1392 = pneg %p1391
      $region38: #{tpu_custom_call.1} parent=5 // pred_check_branch
        %1394 = sbr.rel (%p1392) target = $region40
      $region39: #{tpu_custom_call.1} parent=5 // pred_region
        %s1395 = ssub.s32 %s12, 2
        // Predicated region
        $region41: #{tpu_custom_call.1} parent=39 // pred_check
          %p1396 = pneg %p109
        $region42: #{tpu_custom_call.1} parent=39 // pred_check_branch
          %1398 = sbr.rel (%p1396) target = $region44
        $region43: #{tpu_custom_call.1} parent=39 // pred_region
          %s1399 = sand.u32 %s94, 1
          %s1400 = scalar_lea.sflag [#allocation3], %s1399
          %s1401 = sand.u32 %s94, 1
          %s1402 = smul.addr %s1401, 128
          %s1403 = scalar_lea.vmem [#allocation2], %s1402
          %1404 = dma.done %s1400, 2048
        $region44: #{tpu_custom_call.1} parent=39 // pred_fallthru
          _
      $region40: #{tpu_custom_call.1} parent=5 // pred_fallthru
        _
    $region6: #{tpu_custom_call.1} parent=1 // loop_footer
      %s16 = sadd.s32 1, %s12
    $region7: #{tpu_custom_call.1} parent=1 // loop_footer_branch
      %11 = sbr.rel target = $region3
    $region8: #{tpu_custom_call.1} parent=1 // loop_exit
      _
    %1405 = vsyncpa [#allocation3], 1
    %s1406 = scalar_lea.sflag [#allocation3], 1
    %1407 = vsyncpa %s1406, 1

</llo_original>
